<compile_context>
chip_gen: v5e
topology: v5e:2x2
jax: 0.10.0
libtpu: 0.0.40
codegen_flags: <defaults>
</compile_context>

<pallas_src>
import functools

import jax
import jax.numpy as jnp
from jax import lax
from jax.experimental import pallas as pl
from jax.experimental.pallas import tpu as pltpu


TM_TARGET = 1024                  # A_hat row-tile target (keep >=2 M tiles -> megacore)
TK_TARGET = 2048                  # A_hat reduction-tile target (amortize per-step overhead)
VMEM_BUDGET = 14 * 1024 * 1024    # stay under v5e's 16 MiB default scoped VMEM


# ----------------------------- tiling / padding helpers -----------------------------

def _round_up(x, m):
    return ((x + m - 1) // m) * m


def _pick_tile(dim, target, unit=128):
    """Largest multiple of `unit` <= target that divides dim (dim <= target -> dim)."""
    if dim <= target:
        return dim
    t = (target // unit) * unit
    while t >= unit:
        if dim % t == 0:
            return t
        t -= unit
    return dim  # unreachable once dim is padded to a multiple of 256


def _choose_tiles(num_nodes, hp):
    """Pad N to a 256-multiple and pick (tm, tk) for the A_hat aggregation grid."""
    n_pad = max(256, _round_up(num_nodes, 256))
    # keep >= 2 row tiles where possible so the "parallel" M axis shards across TCs (v7x)
    tm = _pick_tile(n_pad, min(TM_TARGET, max(128, n_pad // 2)))
    tk = _pick_tile(n_pad, TK_TARGET)

    def vmem_est(tm_, tk_):
        a = 2 * tm_ * tk_ * 2      # A_hat tile, bf16, double-buffered
        h = 2 * tk_ * hp * 2       # h tile, bf16, double-buffered
        o = 2 * tm_ * hp * 2       # output tile, bf16, double-buffered
        acc = tm_ * hp * 4         # f32 accumulator scratch
        return a + h + o + acc

    while vmem_est(tm, tk) > VMEM_BUDGET and max(tm, tk) > 256:
        if tk >= tm and tk > 256:
            tk = _pick_tile(n_pad, tk - 128)
        elif tm > 256:
            tm = _pick_tile(n_pad, tm - 128)
        else:
            break
    return n_pad, tm, tk


def _pad_to(x, shape):
    pads = [(0, t - s) for s, t in zip(x.shape, shape)]
    return jnp.pad(x, pads)


def _build_block_maps(a_pad, tm, tk):
    """Per-(i,k)-tile nonzero mask + DMA-reuse kmap for the block-diagonal A_hat.

    kmap[i,k] = last k' <= k with a nonzero block (else first nonzero in row, else 0);
    masked grid steps repeat the previous block index -> Pallas skips their DMA.
    """
    n_pad = a_pad.shape[0]
    num_m, num_k = n_pad // tm, n_pad // tk
    blocks = a_pad.reshape(num_m, tm, num_k, tk)
    mask = (jnp.sum(blocks, axis=(1, 3)) > 0).astype(jnp.int32)      # A_hat entries >= 0
    ks = jnp.arange(num_k, dtype=jnp.int32)
    cand = jnp.where(mask > 0, ks[None, :], -1)
    ffill = lax.cummax(cand, axis=1)
    first_nz = jnp.argmax(mask, axis=1).astype(jnp.int32)
    kmap = jnp.where(ffill >= 0, ffill, first_nz[:, None]).astype(jnp.int32)
    return kmap, mask


# ----------------------------- feature transform kernel (h = X @ W^T) -----------------------------

def _feature_transform_kernel(x_ref, wt_ref, o_ref):
    o_ref[...] = jnp.dot(x_ref[...], wt_ref[...],
                         preferred_element_type=jnp.float32).astype(o_ref.dtype)


def feature_transform(x_bf16, wt_bf16, *, tile=1024):
    """h = X @ W^T, computed once per layer (tiny [N, Hp] bf16 output)."""
    n_pad, fp = x_bf16.shape
    hp = wt_bf16.shape[1]
    tr = _pick_tile(n_pad, tile)
    return pl.pallas_call(
        _feature_transform_kernel,
        out_shape=jax.ShapeDtypeStruct((n_pad, hp), jnp.bfloat16),
        grid_spec=pltpu.PrefetchScalarGridSpec(
            num_scalar_prefetch=0,
            grid=(n_pad // tr,),
            in_specs=[
                pl.BlockSpec((tr, fp), lambda i: (i, 0)),
                pl.BlockSpec((fp, hp), lambda i: (0, 0)),      # W^T resident
            ],
            out_specs=pl.BlockSpec((tr, hp), lambda i: (i, 0)),
        ),
        compiler_params=pltpu.CompilerParams(dimension_semantics=("parallel",)),
    )(x_bf16, wt_bf16)


# ----------------------------- A_hat aggregation kernel -----------------------------

def _gcn_agg_kernel(kmap_ref, mask_ref, a_ref, h_ref, b_ref, o_ref, acc_ref, *, apply_relu):
    """out = act(A_hat @ h + bias), tiled (M tiles x K tiles), zero-block skipping."""
    i = pl.program_id(0)
    k = pl.program_id(1)

    @pl.when(k == 0)
    def _init():
        acc_ref[...] = jnp.zeros_like(acc_ref)

    @pl.when(mask_ref[i, k] != 0)
    def _accum():
        acc_ref[...] += jnp.dot(a_ref[...], h_ref[...],
                                preferred_element_type=jnp.float32)

    @pl.when(k == pl.num_programs(1) - 1)
    def _finalize():
        out = acc_ref[...] + b_ref[...]          # f32 epilogue
        if apply_relu:
            out = jnp.maximum(out, 0.0)
        o_ref[...] = out.astype(o_ref.dtype)


def gcn_aggregate(a_bf16, h_bf16, bias2d, kmap, mask, *, relu, tm, tk):
    n_pad = a_bf16.shape[0]
    hp = h_bf16.shape[1]
    grid = (n_pad // tm, n_pad // tk)
    kernel = functools.partial(_gcn_agg_kernel, apply_relu=relu)
    return pl.pallas_call(
        kernel,
        out_shape=jax.ShapeDtypeStruct((n_pad, hp), jnp.bfloat16),
        grid_spec=pltpu.PrefetchScalarGridSpec(
            num_scalar_prefetch=2,                       # kmap, mask -> SMEM
            grid=grid,
            in_specs=[
                # masked tiles repeat the previous block index -> DMA elided
                pl.BlockSpec((tm, tk), lambda i, k, kmap_r, mask_r: (i, kmap_r[i, k])),
                pl.BlockSpec((tk, hp), lambda i, k, kmap_r, mask_r: (kmap_r[i, k], 0)),
                pl.BlockSpec((1, hp), lambda i, k, kmap_r, mask_r: (0, 0)),   # bias
            ],
            out_specs=pl.BlockSpec((tm, hp), lambda i, k, kmap_r, mask_r: (i, 0)),
            scratch_shapes=[pltpu.VMEM((tm, hp), jnp.float32)],
        ),
        compiler_params=pltpu.CompilerParams(
            dimension_semantics=("parallel", "arbitrary")),
    )(kmap, mask, a_bf16, h_bf16, bias2d)


def gcn_conv_layer(a_bf16, kmap, mask, x_bf16, weight, bias, *, relu, tm, tk, hp):
    """One GCNConv: relu(A_hat @ (x @ W^T) + b), hidden padded to hp lanes."""
    n_pad, fp = x_bf16.shape
    wt = _pad_to(weight, (hp, fp)).T.astype(jnp.bfloat16)             # [fp, hp]
    b2d = _pad_to(bias, (hp,)).astype(jnp.float32).reshape(1, hp)
    h = feature_transform(x_bf16, wt)                                  # [n_pad, hp] bf16
    return gcn_aggregate(a_bf16, h, b2d, kmap, mask, relu=relu, tm=tm, tk=tk)


# ----------------------------- fused pooling + MLP head kernel -----------------------------

def _fused_tail_kernel(p_ref, x_ref, w1t_ref, b1_ref, w2t_ref, b2_ref, o_ref, acc_ref):
    """out = relu(pool @ x @ W1^T + b1) @ W2^T + b2; pooled activations live in VMEM."""
    k = pl.program_id(0)

    @pl.when(k == 0)
    def _init():
        acc_ref[...] = jnp.zeros_like(acc_ref)

    acc_ref[...] += jnp.dot(p_ref[...], x_ref[...], preferred_element_type=jnp.float32)

    @pl.when(k == pl.num_programs(0) - 1)
    def _finalize():
        pooled = acc_ref[...]                                            # [G, Hp] f32
        h1 = jnp.dot(pooled.astype(jnp.bfloat16), w1t_ref[...],
                     preferred_element_type=jnp.float32) + b1_ref[...]    # [G, H/2]
        h1 = jnp.maximum(h1, 0.0)
        out = jnp.dot(h1.astype(jnp.bfloat16), w2t_ref[...],
                      preferred_element_type=jnp.float32) + b2_ref[...]   # [G, C]
        o_ref[...] = out.astype(o_ref.dtype)


def fused_pool_mlp(pool_bf16, x_bf16, lin1_w, lin1_b, lin2_w, lin2_b, *, tile=1024):
    """global_mean_pool -> lin1 -> ReLU -> lin2 in one pallas_call."""
    num_graphs, n_pad = pool_bf16.shape
    hp = x_bf16.shape[1]
    h2 = lin1_w.shape[0]
    c = lin2_w.shape[0]

    w1t = _pad_to(lin1_w, (h2, hp)).T.astype(jnp.bfloat16)   # [hp, h2]; padded cols are zero
    w2t = lin2_w.T.astype(jnp.bfloat16)                       # [h2, c]
    b1 = lin1_b.astype(jnp.float32).reshape(1, h2)
    b2 = lin2_b.astype(jnp.float32).reshape(1, c)

    tk = _pick_tile(n_pad, tile)
    grid = (n_pad // tk,)

    return pl.pallas_call(
        _fused_tail_kernel,
        out_shape=jax.ShapeDtypeStruct((num_graphs, c), jnp.float32),
        grid_spec=pltpu.PrefetchScalarGridSpec(
            num_scalar_prefetch=0,
            grid=grid,
            in_specs=[
                pl.BlockSpec((num_graphs, tk), lambda k: (0, k)),   # pool tile
                pl.BlockSpec((tk, hp), lambda k: (k, 0)),           # node activations tile
                pl.BlockSpec((hp, h2), lambda k: (0, 0)),           # W1^T
                pl.BlockSpec((1, h2), lambda k: (0, 0)),            # b1
                pl.BlockSpec((h2, c), lambda k: (0, 0)),            # W2^T
                pl.BlockSpec((1, c), lambda k: (0, 0)),             # b2
            ],
            out_specs=pl.BlockSpec((num_graphs, c), lambda k: (0, 0)),
            scratch_shapes=[pltpu.VMEM((num_graphs, hp), jnp.float32)],
        ),
        compiler_params=pltpu.CompilerParams(dimension_semantics=("arbitrary",)),
    )(pool_bf16, x_bf16, w1t, b1, w2t, b2)


# ----------------------------- Graph glue (plain JAX) -----------------------------

def gcn_normalized_adjacency(edge_index, num_nodes):
    """Dense A_hat = D^{-1/2} (A + I_remaining) D^{-1/2}, matching PyG gcn_norm."""
    src, dst = edge_index[0], edge_index[1]
    adj = jnp.zeros((num_nodes, num_nodes), jnp.float32)
    # message flows src -> dst: out[dst] += norm * x[src]  =>  A[dst, src] = 1
    adj = adj.at[dst, src].add(1.0)
    # add_remaining_self_loops: only add a self loop where none exists yet.
    idx = jnp.arange(num_nodes)
    diag = jnp.diagonal(adj)
    adj = adj.at[idx, idx].set(jnp.where(diag > 0, diag, 1.0))
    deg = adj.sum(axis=1)
    dinv = jnp.where(deg > 0, 1.0 / jnp.sqrt(deg), 0.0)
    return dinv[:, None] * adj * dinv[None, :]


def mean_pool_matrix(batch, num_nodes, num_graphs):
    """P[g, i] = 1/|graph g| if batch[i] == g else 0  (global_mean_pool)."""
    one_hot = (batch[None, :] == jnp.arange(num_graphs)[:, None]).astype(jnp.float32)
    counts = one_hot.sum(axis=1, keepdims=True)
    return one_hot / jnp.maximum(counts, 1.0)


# ----------------------------- Model -----------------------------

def init_params(key, input_dim, hidden_dim, num_classes):
    ks = jax.random.split(key, 10)

    def glorot(k, shape):
        fan_in, fan_out = shape[1], shape[0]
        lim = jnp.sqrt(6.0 / (fan_in + fan_out))
        return jax.random.uniform(k, shape, jnp.float32, -lim, lim)

    return {
        "conv1_w": glorot(ks[0], (hidden_dim, input_dim)),
        "conv1_b": jnp.zeros((hidden_dim,), jnp.float32),
        "conv2_w": glorot(ks[1], (hidden_dim, hidden_dim)),
        "conv2_b": jnp.zeros((hidden_dim,), jnp.float32),
        "conv3_w": glorot(ks[2], (hidden_dim, hidden_dim)),
        "conv3_b": jnp.zeros((hidden_dim,), jnp.float32),
        "lin1_w": glorot(ks[3], (hidden_dim // 2, hidden_dim)),
        "lin1_b": jax.random.uniform(ks[4], (hidden_dim // 2,), jnp.float32, -0.1, 0.1),
        "lin2_w": glorot(ks[5], (num_classes, hidden_dim // 2)),
        "lin2_b": jax.random.uniform(ks[6], (num_classes,), jnp.float32, -0.1, 0.1),
    }


def _gcn3conv_forward(params, pos, edge_index, batch, num_graphs):
    num_nodes, f_in = pos.shape
    hidden = params["conv1_w"].shape[0]
    hp = _round_up(max(hidden, 128), 128)   # lane-dense hidden dim
    fp = _round_up(max(f_in, 128), 128)     # lane-dense input dim

    n_pad, tm, tk = _choose_tiles(num_nodes, hp)

    a_hat = gcn_normalized_adjacency(edge_index, num_nodes)
    a_pad = _pad_to(a_hat, (n_pad, n_pad))
    kmap, mask = _build_block_maps(a_pad, tm, tk)
    a_bf16 = a_pad.astype(jnp.bfloat16)

    pool = mean_pool_matrix(batch, num_nodes, num_graphs)
    pool_pad = _pad_to(pool, (num_graphs, n_pad)).astype(jnp.bfloat16)

    x = _pad_to(pos.astype(jnp.bfloat16), (n_pad, fp))

    x = gcn_conv_layer(a_bf16, kmap, mask, x, params["conv1_w"], params["conv1_b"],
                       relu=True, tm=tm, tk=tk, hp=hp)
    # dropout: identity (inference)
    x = gcn_conv_layer(a_bf16, kmap, mask, x, params["conv2_w"], params["conv2_b"],
                       relu=True, tm=tm, tk=tk, hp=hp)
    x = gcn_conv_layer(a_bf16, kmap, mask, x, params["conv3_w"], params["conv3_b"],
                       relu=True, tm=tm, tk=tk, hp=hp)

    # global_mean_pool -> lin1 -> ReLU -> lin2, fused in one kernel.
    return fused_pool_mlp(pool_pad, x, params["lin1_w"], params["lin1_b"],
                          params["lin2_w"], params["lin2_b"])


gcn3conv_forward = jax.jit(_gcn3conv_forward, static_argnums=(4,))


# ----------------------------- Demo -----------------------------

if __name__ == "__main__":
    key = jax.random.PRNGKey(0)
    k_param, k_pos, k_edge = jax.random.split(key, 3)

    # Small synthetic point-cloud graph batch.
    input_dim = 3       # data.pos is 3-D coordinates
    hidden_dim = 32
    num_classes = 4
    num_nodes = 64      # 2 graphs x 32 nodes
    num_graphs = 2
    num_edges = 256

    pos = jax.random.normal(k_pos, (num_nodes, input_dim), jnp.float32)
    # random directed edges, kept within each graph's node range
    half = num_nodes // 2
    e1 = jax.random.randint(k_edge, (2, num_edges // 2), 0, half)
    e2 = jax.random.randint(jax.random.fold_in(k_edge, 1), (2, num_edges // 2), half, num_nodes)
    edge_index = jnp.concatenate([e1, e2], axis=1).astype(jnp.int32)
    batch = jnp.concatenate([jnp.zeros((half,), jnp.int32),
                             jnp.ones((half,), jnp.int32)])

    params = init_params(k_param, input_dim, hidden_dim, num_classes)

    out = gcn3conv_forward(params, pos, edge_index, batch, num_graphs)
    out = jax.block_until_ready(out)
    assert out.shape == (num_graphs, num_classes)
    assert jnp.all(jnp.isfinite(out))
    print("KERNEL_OK")
</pallas_src>

<mosaic_0001>
module attributes {stable_mosaic.version = 11 : i64} {
  func.func @_gcn_agg_kernel(%arg0: i32, %arg1: i32, %arg2: memref<2x1xi32, #tpu.memory_space<smem>>, %arg3: memref<2x1xi32, #tpu.memory_space<smem>>, %arg4: memref<128x256xbf16, #tpu.memory_space<vmem>>, %arg5: memref<256x128xbf16, #tpu.memory_space<vmem>>, %arg6: memref<1x128xf32, #tpu.memory_space<vmem>>, %arg7: memref<128x128xbf16, #tpu.memory_space<vmem>>, %arg8: memref<128x128xf32, #tpu.memory_space<vmem>>) attributes {dimension_semantics = [#tpu.dimension_semantics<parallel>, #tpu.dimension_semantics<arbitrary>], iteration_bounds = array<i64: 2, 1>, scalar_prefetch = 2 : i64, scratch_operands = 1 : i64, tpu.core_type = #tpu.core_type<tc>, window_params = [{transform_indices = @transform_0, window_bounds = array<i64: 128, 256>}, {transform_indices = @transform_1, window_bounds = array<i64: 256, 128>}, {pipeline_mode = #tpu.pipeline_mode<synchronous>, transform_indices = @transform_2, window_bounds = array<i64: 1, 128>}, {transform_indices = @transform_3, window_bounds = array<i64: 128, 128>}]} {
    %c0_i32 = arith.constant 0 : i32
    %0 = arith.cmpi eq, %arg1, %c0_i32 : i32
    %1 = arith.extui %0 : i1 to i32
    %c0_i32_0 = arith.constant 0 : i32
    %2 = arith.cmpi ne, %1, %c0_i32_0 : i32
    scf.if %2 {
      %cst = arith.constant 0.000000e+00 : f32
      %12 = vector.broadcast %cst : f32 to vector<128x128xf32>
      %c0 = arith.constant 0 : index
      %c0_5 = arith.constant 0 : index
      %13 = vector.load %arg8[%c0, %c0_5] : memref<128x128xf32, #tpu.memory_space<vmem>>, vector<128x128xf32>
      tpu.vector_store %arg8[%c0, %c0_5], %12 {strides = array<i32>} : memref<128x128xf32, #tpu.memory_space<vmem>>, vector<128x128xf32>,
    } else {
    }
    %3 = arith.index_cast %arg0 : i32 to index
    %4 = arith.index_cast %arg1 : i32 to index
    %5 = memref.load %arg3[%3, %4] : memref<2x1xi32, #tpu.memory_space<smem>>
    %c0_i32_1 = arith.constant 0 : i32
    %6 = arith.cmpi ne, %5, %c0_i32_1 : i32
    %7 = arith.extui %6 : i1 to i32
    %c0_i32_2 = arith.constant 0 : i32
    %8 = arith.cmpi ne, %7, %c0_i32_2 : i32
    scf.if %8 {
      %c0 = arith.constant 0 : index
      %c0_5 = arith.constant 0 : index
      %12 = vector.load %arg8[%c0, %c0_5] : memref<128x128xf32, #tpu.memory_space<vmem>>, vector<128x128xf32>
      %c0_6 = arith.constant 0 : index
      %c0_7 = arith.constant 0 : index
      %13 = vector.load %arg4[%c0_6, %c0_7] : memref<128x256xbf16, #tpu.memory_space<vmem>>, vector<128x256xbf16>
      %c0_8 = arith.constant 0 : index
      %c0_9 = arith.constant 0 : index
      %14 = vector.load %arg5[%c0_8, %c0_9] : memref<256x128xbf16, #tpu.memory_space<vmem>>, vector<256x128xbf16>
      %cst = arith.constant dense<0.000000e+00> : vector<128x128xf32>
      %15 = tpu.matmul %13, %14, %cst {dimension_numbers = #tpu.dot_dimension_numbers<[1], [0], [0], [1], [0, 0, 1, 1], [], []>} : vector<128x256xbf16>, vector<256x128xbf16>, vector<128x128xf32> -> vector<128x128xf32>
      %16 = arith.addf %12, %15 : vector<128x128xf32>
      %c0_10 = arith.constant 0 : index
      %c0_11 = arith.constant 0 : index
      %17 = vector.load %arg8[%c0_10, %c0_11] : memref<128x128xf32, #tpu.memory_space<vmem>>, vector<128x128xf32>
      tpu.vector_store %arg8[%c0_10, %c0_11], %16 {strides = array<i32>} : memref<128x128xf32, #tpu.memory_space<vmem>>, vector<128x128xf32>,
    } else {
    }
    %c0_i32_3 = arith.constant 0 : i32
    %9 = arith.cmpi eq, %arg1, %c0_i32_3 : i32
    %10 = arith.extui %9 : i1 to i32
    %c0_i32_4 = arith.constant 0 : i32
    %11 = arith.cmpi ne, %10, %c0_i32_4 : i32
    scf.if %11 {
      %c0 = arith.constant 0 : index
      %c0_5 = arith.constant 0 : index
      %12 = vector.load %arg8[%c0, %c0_5] : memref<128x128xf32, #tpu.memory_space<vmem>>, vector<128x128xf32>
      %c0_6 = arith.constant 0 : index
      %c0_7 = arith.constant 0 : index
      %13 = vector.load %arg6[%c0_6, %c0_7] : memref<1x128xf32, #tpu.memory_space<vmem>>, vector<1x128xf32>
      %14 = vector.broadcast %13 : vector<1x128xf32> to vector<128x128xf32>
      %15 = arith.addf %12, %14 : vector<128x128xf32>
      %cst = arith.constant 0.000000e+00 : f32
      %16 = vector.broadcast %cst : f32 to vector<128x128xf32>
      %17 = arith.maximumf %15, %16 : vector<128x128xf32>
      %18 = arith.truncf %17 : vector<128x128xf32> to vector<128x128xbf16>
      %c0_8 = arith.constant 0 : index
      %c0_9 = arith.constant 0 : index
      %19 = vector.load %arg7[%c0_8, %c0_9] : memref<128x128xbf16, #tpu.memory_space<vmem>>, vector<128x128xbf16>
      tpu.vector_store %arg7[%c0_8, %c0_9], %18 {strides = array<i32>} : memref<128x128xbf16, #tpu.memory_space<vmem>>, vector<128x128xbf16>,
    } else {
    }
    return
  }
  func.func @transform_0(%arg0: i32, %arg1: i32, %arg2: memref<2x1xi32, #tpu.memory_space<smem>>, %arg3: memref<2x1xi32, #tpu.memory_space<smem>>) -> (i32, i32) {
    %0 = arith.index_cast %arg0 : i32 to index
    %1 = arith.index_cast %arg1 : i32 to index
    %2 = memref.load %arg2[%0, %1] : memref<2x1xi32, #tpu.memory_space<smem>>
    %c0_i32 = arith.constant 0 : i32
    return %arg0, %2 : i32, i32
  }
  func.func @transform_1(%arg0: i32, %arg1: i32, %arg2: memref<2x1xi32, #tpu.memory_space<smem>>, %arg3: memref<2x1xi32, #tpu.memory_space<smem>>) -> (i32, i32) {
    %0 = arith.index_cast %arg0 : i32 to index
    %1 = arith.index_cast %arg1 : i32 to index
    %2 = memref.load %arg2[%0, %1] : memref<2x1xi32, #tpu.memory_space<smem>>
    %c0_i32 = arith.constant 0 : i32
    %c0_i32_0 = arith.constant 0 : i32
    return %2, %c0_i32 : i32, i32
  }
  func.func @transform_2(%arg0: i32, %arg1: i32, %arg2: memref<2x1xi32, #tpu.memory_space<smem>>, %arg3: memref<2x1xi32, #tpu.memory_space<smem>>) -> (i32, i32) {
    %c0_i32 = arith.constant 0 : i32
    %c0_i32_0 = arith.constant 0 : i32
    %c0_i32_1 = arith.constant 0 : i32
    return %c0_i32, %c0_i32_0 : i32, i32
  }
  func.func @transform_3(%arg0: i32, %arg1: i32, %arg2: memref<2x1xi32, #tpu.memory_space<smem>>, %arg3: memref<2x1xi32, #tpu.memory_space<smem>>) -> (i32, i32) {
    %c0_i32 = arith.constant 0 : i32
    %c0_i32_0 = arith.constant 0 : i32
    return %arg0, %c0_i32 : i32, i32
  }
}

module attributes {stable_mosaic.version = 11 : i64} {
  func.func @_feature_transform_kernel(%arg0: i32, %arg1: memref<256x128xbf16, #tpu.memory_space<vmem>>, %arg2: memref<128x128xbf16, #tpu.memory_space<vmem>>, %arg3: memref<256x128xbf16, #tpu.memory_space<vmem>>) attributes {dimension_semantics = [#tpu.dimension_semantics<parallel>], iteration_bounds = array<i64: 1>, scalar_prefetch = 0 : i64, scratch_operands = 0 : i64, tpu.core_type = #tpu.core_type<tc>, window_params = [{transform_indices = @transform_0, window_bounds = array<i64: 256, 128>}, {pipeline_mode = #tpu.pipeline_mode<synchronous>, transform_indices = @transform_1, window_bounds = array<i64: 128, 128>}, {transform_indices = @transform_2, window_bounds = array<i64: 256, 128>}]} {
    %c0 = arith.constant 0 : index
    %c0_0 = arith.constant 0 : index
    %0 = vector.load %arg1[%c0, %c0_0] : memref<256x128xbf16, #tpu.memory_space<vmem>>, vector<256x128xbf16>
    %c0_1 = arith.constant 0 : index
    %c0_2 = arith.constant 0 : index
    %1 = vector.load %arg2[%c0_1, %c0_2] : memref<128x128xbf16, #tpu.memory_space<vmem>>, vector<128x128xbf16>
    %cst = arith.constant dense<0.000000e+00> : vector<256x128xf32>
    %2 = tpu.matmul %0, %1, %cst {dimension_numbers = #tpu.dot_dimension_numbers<[1], [0], [0], [1], [0, 0, 1, 1], [], []>} : vector<256x128xbf16>, vector<128x128xbf16>, vector<256x128xf32> -> vector<256x128xf32>
    %3 = arith.truncf %2 : vector<256x128xf32> to vector<256x128xbf16>
    %c0_3 = arith.constant 0 : index
    %c0_4 = arith.constant 0 : index
    %4 = vector.load %arg3[%c0_3, %c0_4] : memref<256x128xbf16, #tpu.memory_space<vmem>>, vector<256x128xbf16>
    tpu.vector_store %arg3[%c0_3, %c0_4], %3 {strides = array<i32>} : memref<256x128xbf16, #tpu.memory_space<vmem>>, vector<256x128xbf16>,
    return
  }
  func.func @transform_0(%arg0: i32) -> (i32, i32) {
    %c0_i32 = arith.constant 0 : i32
    %c0_i32_0 = arith.constant 0 : i32
    return %arg0, %c0_i32 : i32, i32
  }
  func.func @transform_1(%arg0: i32) -> (i32, i32) {
    %c0_i32 = arith.constant 0 : i32
    %c0_i32_0 = arith.constant 0 : i32
    %c0_i32_1 = arith.constant 0 : i32
    return %c0_i32, %c0_i32_0 : i32, i32
  }
  func.func @transform_2(%arg0: i32) -> (i32, i32) {
    %c0_i32 = arith.constant 0 : i32
    %c0_i32_0 = arith.constant 0 : i32
    return %arg0, %c0_i32 : i32, i32
  }
}

module attributes {stable_mosaic.version = 11 : i64} {
  func.func @_fused_tail_kernel(%arg0: i32, %arg1: memref<2x256xbf16, #tpu.memory_space<vmem>>, %arg2: memref<256x128xbf16, #tpu.memory_space<vmem>>, %arg3: memref<128x16xbf16, #tpu.memory_space<vmem>>, %arg4: memref<1x16xf32, #tpu.memory_space<vmem>>, %arg5: memref<16x4xbf16, #tpu.memory_space<vmem>>, %arg6: memref<1x4xf32, #tpu.memory_space<vmem>>, %arg7: memref<2x4xf32, #tpu.memory_space<vmem>>, %arg8: memref<2x128xf32, #tpu.memory_space<vmem>>) attributes {dimension_semantics = [#tpu.dimension_semantics<arbitrary>], iteration_bounds = array<i64: 1>, scalar_prefetch = 0 : i64, scratch_operands = 1 : i64, tpu.core_type = #tpu.core_type<tc>, window_params = [{transform_indices = @transform_0, window_bounds = array<i64: 2, 256>}, {transform_indices = @transform_1, window_bounds = array<i64: 256, 128>}, {pipeline_mode = #tpu.pipeline_mode<synchronous>, transform_indices = @transform_2, window_bounds = array<i64: 128, 16>}, {pipeline_mode = #tpu.pipeline_mode<synchronous>, transform_indices = @transform_3, window_bounds = array<i64: 1, 16>}, {pipeline_mode = #tpu.pipeline_mode<synchronous>, transform_indices = @transform_4, window_bounds = array<i64: 16, 4>}, {pipeline_mode = #tpu.pipeline_mode<synchronous>, transform_indices = @transform_5, window_bounds = array<i64: 1, 4>}, {pipeline_mode = #tpu.pipeline_mode<synchronous>, transform_indices = @transform_6, window_bounds = array<i64: 2, 4>}]} {
    %c0_i32 = arith.constant 0 : i32
    %0 = arith.cmpi eq, %arg0, %c0_i32 : i32
    %1 = arith.extui %0 : i1 to i32
    %c0_i32_0 = arith.constant 0 : i32
    %2 = arith.cmpi ne, %1, %c0_i32_0 : i32
    scf.if %2 {
      %cst_10 = arith.constant 0.000000e+00 : f32
      %12 = vector.broadcast %cst_10 : f32 to vector<2x128xf32>
      %c0_11 = arith.constant 0 : index
      %c0_12 = arith.constant 0 : index
      %13 = vector.load %arg8[%c0_11, %c0_12] : memref<2x128xf32, #tpu.memory_space<vmem>>, vector<2x128xf32>
      tpu.vector_store %arg8[%c0_11, %c0_12], %12 {strides = array<i32>} : memref<2x128xf32, #tpu.memory_space<vmem>>, vector<2x128xf32>,
    } else {
    }
    %c0 = arith.constant 0 : index
    %c0_1 = arith.constant 0 : index
    %3 = vector.load %arg8[%c0, %c0_1] : memref<2x128xf32, #tpu.memory_space<vmem>>, vector<2x128xf32>
    %c0_2 = arith.constant 0 : index
    %c0_3 = arith.constant 0 : index
    %4 = vector.load %arg1[%c0_2, %c0_3] : memref<2x256xbf16, #tpu.memory_space<vmem>>, vector<2x256xbf16>
    %c0_4 = arith.constant 0 : index
    %c0_5 = arith.constant 0 : index
    %5 = vector.load %arg2[%c0_4, %c0_5] : memref<256x128xbf16, #tpu.memory_space<vmem>>, vector<256x128xbf16>
    %cst = arith.constant dense<0.000000e+00> : vector<2x128xf32>
    %6 = tpu.matmul %4, %5, %cst {dimension_numbers = #tpu.dot_dimension_numbers<[1], [0], [0], [1], [0, 0, 1, 1], [], []>} : vector<2x256xbf16>, vector<256x128xbf16>, vector<2x128xf32> -> vector<2x128xf32>
    %7 = arith.addf %3, %6 : vector<2x128xf32>
    %c0_6 = arith.constant 0 : index
    %c0_7 = arith.constant 0 : index
    %8 = vector.load %arg8[%c0_6, %c0_7] : memref<2x128xf32, #tpu.memory_space<vmem>>, vector<2x128xf32>
    tpu.vector_store %arg8[%c0_6, %c0_7], %7 {strides = array<i32>} : memref<2x128xf32, #tpu.memory_space<vmem>>, vector<2x128xf32>,
    %c0_i32_8 = arith.constant 0 : i32
    %9 = arith.cmpi eq, %arg0, %c0_i32_8 : i32
    %10 = arith.extui %9 : i1 to i32
    %c0_i32_9 = arith.constant 0 : i32
    %11 = arith.cmpi ne, %10, %c0_i32_9 : i32
    scf.if %11 {
      %c0_10 = arith.constant 0 : index
      %c0_11 = arith.constant 0 : index
      %12 = vector.load %arg8[%c0_10, %c0_11] : memref<2x128xf32, #tpu.memory_space<vmem>>, vector<2x128xf32>
      %13 = arith.truncf %12 : vector<2x128xf32> to vector<2x128xbf16>
      %c0_12 = arith.constant 0 : index
      %c0_13 = arith.constant 0 : index
      %14 = vector.load %arg3[%c0_12, %c0_13] : memref<128x16xbf16, #tpu.memory_space<vmem>>, vector<128x16xbf16>
      %cst_14 = arith.constant dense<0.000000e+00> : vector<2x16xf32>
      %15 = tpu.matmul %13, %14, %cst_14 {dimension_numbers = #tpu.dot_dimension_numbers<[1], [0], [0], [1], [0, 0, 1, 1], [], []>} : vector<2x128xbf16>, vector<128x16xbf16>, vector<2x16xf32> -> vector<2x16xf32>
      %c0_15 = arith.constant 0 : index
      %c0_16 = arith.constant 0 : index
      %16 = vector.load %arg4[%c0_15, %c0_16] : memref<1x16xf32, #tpu.memory_space<vmem>>, vector<1x16xf32>
      %17 = vector.broadcast %16 : vector<1x16xf32> to vector<2x16xf32>
      %18 = arith.addf %15, %17 : vector<2x16xf32>
      %cst_17 = arith.constant 0.000000e+00 : f32
      %19 = vector.broadcast %cst_17 : f32 to vector<2x16xf32>
      %20 = arith.maximumf %18, %19 : vector<2x16xf32>
      %21 = arith.truncf %20 : vector<2x16xf32> to vector<2x16xbf16>
      %c0_18 = arith.constant 0 : index
      %c0_19 = arith.constant 0 : index
      %22 = vector.load %arg5[%c0_18, %c0_19] : memref<16x4xbf16, #tpu.memory_space<vmem>>, vector<16x4xbf16>
      %cst_20 = arith.constant dense<0.000000e+00> : vector<2x4xf32>
      %23 = tpu.matmul %21, %22, %cst_20 {dimension_numbers = #tpu.dot_dimension_numbers<[1], [0], [0], [1], [0, 0, 1, 1], [], []>} : vector<2x16xbf16>, vector<16x4xbf16>, vector<2x4xf32> -> vector<2x4xf32>
      %c0_21 = arith.constant 0 : index
      %c0_22 = arith.constant 0 : index
      %24 = vector.load %arg6[%c0_21, %c0_22] : memref<1x4xf32, #tpu.memory_space<vmem>>, vector<1x4xf32>
      %25 = vector.broadcast %24 : vector<1x4xf32> to vector<2x4xf32>
      %26 = arith.addf %23, %25 : vector<2x4xf32>
      %c0_23 = arith.constant 0 : index
      %c0_24 = arith.constant 0 : index
      %27 = vector.load %arg7[%c0_23, %c0_24] : memref<2x4xf32, #tpu.memory_space<vmem>>, vector<2x4xf32>
      tpu.vector_store %arg7[%c0_23, %c0_24], %26 {strides = array<i32>} : memref<2x4xf32, #tpu.memory_space<vmem>>, vector<2x4xf32>,
    } else {
    }
    return
  }
  func.func @transform_0(%arg0: i32) -> (i32, i32) {
    %c0_i32 = arith.constant 0 : i32
    %c0_i32_0 = arith.constant 0 : i32
    return %c0_i32, %arg0 : i32, i32
  }
  func.func @transform_1(%arg0: i32) -> (i32, i32) {
    %c0_i32 = arith.constant 0 : i32
    %c0_i32_0 = arith.constant 0 : i32
    return %arg0, %c0_i32 : i32, i32
  }
  func.func @transform_2(%arg0: i32) -> (i32, i32) {
    %c0_i32 = arith.constant 0 : i32
    %c0_i32_0 = arith.constant 0 : i32
    %c0_i32_1 = arith.constant 0 : i32
    return %c0_i32, %c0_i32_0 : i32, i32
  }
  func.func @transform_3(%arg0: i32) -> (i32, i32) {
    %c0_i32 = arith.constant 0 : i32
    %c0_i32_0 = arith.constant 0 : i32
    %c0_i32_1 = arith.constant 0 : i32
    return %c0_i32, %c0_i32_0 : i32, i32
  }
  func.func @transform_4(%arg0: i32) -> (i32, i32) {
    %c0_i32 = arith.constant 0 : i32
    %c0_i32_0 = arith.constant 0 : i32
    %c0_i32_1 = arith.constant 0 : i32
    return %c0_i32, %c0_i32_0 : i32, i32
  }
  func.func @transform_5(%arg0: i32) -> (i32, i32) {
    %c0_i32 = arith.constant 0 : i32
    %c0_i32_0 = arith.constant 0 : i32
    %c0_i32_1 = arith.constant 0 : i32
    return %c0_i32, %c0_i32_0 : i32, i32
  }
  func.func @transform_6(%arg0: i32) -> (i32, i32) {
    %c0_i32 = arith.constant 0 : i32
    %c0_i32_0 = arith.constant 0 : i32
    %c0_i32_1 = arith.constant 0 : i32
    return %c0_i32, %c0_i32_0 : i32, i32
  }
}

</mosaic_0001>

<llo_original>
// kernel: _gcn3conv_forward.8
$region0: #{_gcn3conv_forward.8}
  #allocation0 [shape = 'u32[]', space=smem, size = 0x4, offset = 0x4, fixed_abs, tag = 'smem constant byte address 0x4 - core index']
  #allocation1 [shape = 'u32[72,128]{1,0:T(1,128)}', space=vmem, size = 0x9000, scoped, tag = 'internal scratch']
  #allocation2 [shape = 'f32[128,128]{1,0:T(8,128)}', space=vmem, size = 0x10000, scoped, tag = 'scratch operand']
  #allocation3 [shape = 's32[1]{0}', space=sflag, size = 0x4, scoped, tag = 'scoped memory for _gcn3conv_forward.8']
  #allocation4 [shape = 'u8[1024]{0}', space=smem, size = 0x400, scoped, tag = 'prefetched SMEM operand 0']
  #allocation5 [shape = 'u8[1024]{0}', space=smem, size = 0x400, scoped, tag = 'prefetched SMEM operand 1']
  %s0 = inlined_call_operand.vmem [shape: s32[2,1], index: 0, kind: input, shape index: {}]
  %s1 = inlined_call_operand.vmem [shape: s32[2,1], index: 1, kind: input, shape index: {}]
  %s2 = inlined_call_operand.vmem [shape: bf16[256,256], index: 2, kind: input, shape index: {}]
  %s3 = inlined_call_operand.vmem [shape: bf16[256,128], index: 3, kind: input, shape index: {}]
  %s4 = inlined_call_operand.vmem [shape: f32[1,128], index: 4, kind: input, shape index: {}]
  %s5 = inlined_call_operand.vmem [shape: bf16[256,128], index: 5, kind: output, shape index: {}]
  %s6 = sld [smem:[#allocation0]]
  $region57: #{_gcn3conv_forward.8} parent=0
    _
  %s8 = ssub.s32 1, %s6
  %s9 = scalar_select 0, %s8, %s6
  %s11 = sshll.u32 %s0, 4
  %s12 = int_to_ptr.vmem [resolvable:$true] %s11
  %14 = dma.vmem_to_smem %s12, 32, [#allocation4], [#allocation3]
  %s16 = sshll.u32 %s1, 4
  %s17 = int_to_ptr.vmem [resolvable:$true] %s16
  %19 = dma.vmem_to_smem %s17, 32, [#allocation5], [#allocation3]
  %21 = dma.done [#allocation3], 64
  %22 = sfence
  loop: start=0, step=1, limit=4
  $region2: #{_gcn3conv_forward.8} parent=0 // loop_pre_header
    _
  $region3: #{_gcn3conv_forward.8} parent=0 // loop_header
    %s24 = sphi 0, %s28
    %p25 = scmp.ge.s32.totalorder %s24, 4
    %s31 = sphi 0, %s43
    %s32 = sphi 0, %s39
    %s33 = sphi 0, %s31
    %s34 = sphi 0, %s32
    %s35 = sphi 0, %s33
    %s36 = sphi 0, %s34
    %s64 = sphi 0, %s66
    %s67 = sphi 0, %s64
    %s68 = sphi 0, %s67
    %s84 = sphi 0, %s68
    %s106 = sphi 0, %s108
    %s109 = sphi 0, %s106
    %s110 = sphi 0, %s109
    %s126 = sphi 0, %s110
    %s130 = sphi 0, %s130
    %s132 = sphi 0, %s130
    %s133 = sphi 0, %s132
    %s147 = sphi 0, %s133
    %s153 = sphi 0, %s155
    %s156 = sphi 0, %s153
    %s157 = sphi 0, %s156
    %s173 = sphi 0, %s157
  $region4: #{_gcn3conv_forward.8} parent=0 // loop_header_branch
    %27 = sbr.rel (%p25) target = $region8
  $region5: #{_gcn3conv_forward.8} parent=0 // loop_body
    %s29 = ssub.s32 %s24, 1
    %s30 = ssub.s32 %s24, 2
    %s37 = sadd.s32 1, %s32
    %p38 = scmp.ge.s32.totalorder %s37, 1
    %s39 = scalar_select %p38, 0, %s37
    %s40 = sadd.s32 1, %s31
    %s41 = scalar_select %p38, %s40, %s31
    %p42 = scmp.ge.s32.totalorder %s41, 2
    %s43 = scalar_select %p42, 0, %s41
    %s44 = sshra.s32 %s32, 7
    %s45 = sand.u32 %s32, 127
    %s46 = sadd.s32 %s44, %s31
    %s47 = smul.u32 %s46, 128
    %s48 = sshra.s32 %s32, 7
    %s49 = sand.u32 %s32, 127
    %s50 = sadd.s32 %s47, %s49
    %s51 = sld [smem:[#allocation4 + %s50]]
    %s52 = sshra.s32 %s39, 7
    %s53 = sand.u32 %s39, 127
    %s54 = sadd.s32 %s52, %s43
    %s55 = smul.u32 %s54, 128
    %s56 = sshra.s32 %s39, 7
    %s57 = sand.u32 %s39, 127
    %s58 = sadd.s32 %s55, %s57
    %s59 = sld [smem:[#allocation4 + %s58]]
    %s60 = ssub.s32 %s31, %s43
    %s61 = ssub.s32 %s51, %s59
    %s62 = sor.u32 %s60, %s61
    %p63 = scmp.eq.s32.totalorder %s62, 0
    %s65 = sadd.s32 %s64, 1
    %s66 = scalar_select %p63, %s64, %s65
    %p69 = pneg %p63
    %p70 = scmp.eq.s32.totalorder %s24, 1
    %p71 = por %p69, %p70
    %p72 = scmp.ne.s32.totalorder %s64, %s67
    %p73 = scmp.eq.s32.totalorder %s24, 0
    %p74 = por %p72, %p73
    %p75 = scmp.ne.s32.totalorder %s64, %s67
    %p76 = scmp.eq.s32.totalorder %s29, 1
    %p77 = por %p75, %p76
    %p78 = scmp.ne.s32.totalorder %s67, %s68
    %p79 = scmp.eq.s32.totalorder %s29, 0
    %p80 = por %p78, %p79
    %p81 = scmp.ne.s32.totalorder %s67, %s68
    %p82 = scmp.eq.s32.totalorder %s30, 1
    %p83 = por %p81, %p82
    %p85 = scmp.ne.s32.totalorder %s68, %s84
    %p86 = scmp.eq.s32.totalorder %s30, 0
    %p87 = por %p85, %p86
    %s88 = sshra.s32 %s32, 7
    %s89 = sand.u32 %s32, 127
    %s90 = sadd.s32 %s88, %s31
    %s91 = smul.u32 %s90, 128
    %s92 = sshra.s32 %s32, 7
    %s93 = sand.u32 %s32, 127
    %s94 = sadd.s32 %s91, %s93
    %s95 = sld [smem:[#allocation4 + %s94]]
    %s96 = sshra.s32 %s39, 7
    %s97 = sand.u32 %s39, 127
    %s98 = sadd.s32 %s96, %s43
    %s99 = smul.u32 %s98, 128
    %s100 = sshra.s32 %s39, 7
    %s101 = sand.u32 %s39, 127
    %s102 = sadd.s32 %s99, %s101
    %s103 = sld [smem:[#allocation4 + %s102]]
    %s104 = ssub.s32 %s95, %s103
    %p105 = scmp.eq.s32.totalorder %s104, 0
    %s107 = sadd.s32 %s106, 1
    %s108 = scalar_select %p105, %s106, %s107
    %p111 = pneg %p105
    %p112 = scmp.eq.s32.totalorder %s24, 1
    %p113 = por %p111, %p112
    %p114 = scmp.ne.s32.totalorder %s106, %s109
    %p115 = scmp.eq.s32.totalorder %s24, 0
    %p116 = por %p114, %p115
    %p117 = scmp.ne.s32.totalorder %s106, %s109
    %p118 = scmp.eq.s32.totalorder %s29, 1
    %p119 = por %p117, %p118
    %p120 = scmp.ne.s32.totalorder %s109, %s110
    %p121 = scmp.eq.s32.totalorder %s29, 0
    %p122 = por %p120, %p121
    %p123 = scmp.ne.s32.totalorder %s109, %s110
    %p124 = scmp.eq.s32.totalorder %s30, 1
    %p125 = por %p123, %p124
    %p127 = scmp.ne.s32.totalorder %s110, %s126
    %p128 = scmp.eq.s32.totalorder %s30, 0
    %p129 = por %p127, %p128
    %s131 = sadd.s32 %s130, 1
    %p134 = scmp.eq.s32.totalorder %s24, 1
    %p135 = scmp.ne.s32.totalorder %s130, %s132
    %p136 = scmp.eq.s32.totalorder %s24, 0
    %p137 = por %p135, %p136
    %p138 = scmp.ne.s32.totalorder %s130, %s132
    %p139 = scmp.eq.s32.totalorder %s29, 1
    %p140 = por %p138, %p139
    %p141 = scmp.ne.s32.totalorder %s132, %s133
    %p142 = scmp.eq.s32.totalorder %s29, 0
    %p143 = por %p141, %p142
    %p144 = scmp.ne.s32.totalorder %s132, %s133
    %p145 = scmp.eq.s32.totalorder %s30, 1
    %p146 = por %p144, %p145
    %p148 = scmp.ne.s32.totalorder %s133, %s147
    %p149 = scmp.eq.s32.totalorder %s30, 0
    %p150 = por %p148, %p149
    %s151 = ssub.s32 %s31, %s43
    %p152 = scmp.eq.s32.totalorder %s151, 0
    %s154 = sadd.s32 %s153, 1
    %s155 = scalar_select %p152, %s153, %s154
    %p158 = pneg %p152
    %p159 = scmp.eq.s32.totalorder %s24, 1
    %p160 = por %p158, %p159
    %p161 = scmp.ne.s32.totalorder %s153, %s156
    %p162 = scmp.eq.s32.totalorder %s24, 0
    %p163 = por %p161, %p162
    %p164 = scmp.ne.s32.totalorder %s153, %s156
    %p165 = scmp.eq.s32.totalorder %s29, 1
    %p166 = por %p164, %p165
    %p167 = scmp.ne.s32.totalorder %s156, %s157
    %p168 = scmp.eq.s32.totalorder %s29, 0
    %p169 = por %p167, %p168
    %p170 = scmp.ne.s32.totalorder %s156, %s157
    %p171 = scmp.eq.s32.totalorder %s30, 1
    %p172 = por %p170, %p171
    %p174 = scmp.ne.s32.totalorder %s157, %s173
    %p175 = scmp.eq.s32.totalorder %s30, 0
    %p176 = por %p174, %p175
    %p177 = scmp.le.s32.totalorder 1, %s24
    %p178 = scmp.lt.s32.totalorder %s24, 3
    %p179 = pnand %p177, %p178
    %p180 = pneg %p179
    // Predicated region
    $region9: #{_gcn3conv_forward.8} parent=5 // pred_check
      _
    $region10: #{_gcn3conv_forward.8} parent=5 // pred_check_branch
      %182 = sbr.rel (%p179) target = $region12
    $region11: #{_gcn3conv_forward.8} parent=5 // pred_region
      %s183 = ssub.s32 %s24, 1
      // Predicated region
      $region13: #{_gcn3conv_forward.8} parent=11 // pred_check
        %p184 = pneg %p143
      $region14: #{_gcn3conv_forward.8} parent=11 // pred_check_branch
        %186 = sbr.rel (%p184) target = $region16
      $region15: #{_gcn3conv_forward.8} parent=11 // pred_region
        _
      $region16: #{_gcn3conv_forward.8} parent=11 // pred_fallthru
        _
    $region12: #{_gcn3conv_forward.8} parent=5 // pred_fallthru
      _
    %p187 = scmp.lt.s32.totalorder %s24, 2
    // Predicated region
    $region17: #{_gcn3conv_forward.8} parent=5 // pred_check
      %p188 = pneg %p187
    $region18: #{_gcn3conv_forward.8} parent=5 // pred_check_branch
      %190 = sbr.rel (%p188) target = $region20
    $region19: #{_gcn3conv_forward.8} parent=5 // pred_region
      // Predicated region
      $region21: #{_gcn3conv_forward.8} parent=19 // pred_check
        %p191 = pneg %p74
      $region22: #{_gcn3conv_forward.8} parent=19 // pred_check_branch
        %193 = sbr.rel (%p191) target = $region24
      $region23: #{_gcn3conv_forward.8} parent=19 // pred_region
        %s194 = sshra.s32 %s32, 7
        %s195 = sand.u32 %s32, 127
        %s196 = sadd.s32 %s194, %s31
        %s197 = smul.u32 %s196, 128
        %s198 = sshra.s32 %s32, 7
        %s199 = sand.u32 %s32, 127
        %s200 = sadd.s32 %s197, %s199
        %s201 = sld [smem:[#allocation4 + %s200]]
        %s202 = smul.u32 16, %s31
        %s203 = smul.u32 2, %s201
        %p204 = scmp.lt.s32.totalorder %s202, 31
        %s205 = scalar_select %p204, %s202, 31
        %p206 = scmp.lt.s32.totalorder %s203, 1
        %s207 = scalar_select %p206, %s203, 1
        %s208 = smul.addr %s205, 2
        %s209 = sadd.s32 %s207, %s208
        %s210 = smul.addr %s209, 4
        %s211 = scalar_lea.vmem %s2, %s210
        %s212 = sshra.s32 %s32, 7
        %s213 = sand.u32 %s32, 127
        %s214 = sadd.s32 %s212, %s31
        %s215 = smul.u32 %s214, 128
        %s216 = sshra.s32 %s32, 7
        %s217 = sand.u32 %s32, 127
        %s218 = sadd.s32 %s215, %s217
        %s219 = sld [smem:[#allocation4 + %s218]]
        %s220 = smul.u32 16, %s31
        %s221 = smul.u32 2, %s219
      $region24: #{_gcn3conv_forward.8} parent=19 // pred_fallthru
        _
      // Predicated region
      $region25: #{_gcn3conv_forward.8} parent=19 // pred_check
        %p222 = pneg %p116
      $region26: #{_gcn3conv_forward.8} parent=19 // pred_check_branch
        %224 = sbr.rel (%p222) target = $region28
      $region27: #{_gcn3conv_forward.8} parent=19 // pred_region
        %s225 = sshra.s32 %s32, 7
        %s226 = sand.u32 %s32, 127
        %s227 = sadd.s32 %s225, %s31
        %s228 = smul.u32 %s227, 128
        %s229 = sshra.s32 %s32, 7
        %s230 = sand.u32 %s32, 127
        %s231 = sadd.s32 %s228, %s230
        %s232 = sld [smem:[#allocation4 + %s231]]
        %s233 = smul.u32 32, %s232
        %p234 = scmp.lt.s32.totalorder %s233, 31
        %s235 = scalar_select %p234, %s233, 31
        %s236 = smul.addr %s235, 4
        %s237 = scalar_lea.vmem %s3, %s236
        %s238 = sshra.s32 %s32, 7
        %s239 = sand.u32 %s32, 127
        %s240 = sadd.s32 %s238, %s31
        %s241 = smul.u32 %s240, 128
        %s242 = sshra.s32 %s32, 7
        %s243 = sand.u32 %s32, 127
        %s244 = sadd.s32 %s241, %s243
        %s245 = sld [smem:[#allocation4 + %s244]]
        %s246 = smul.u32 32, %s245
      $region28: #{_gcn3conv_forward.8} parent=19 // pred_fallthru
        _
    $region20: #{_gcn3conv_forward.8} parent=5 // pred_fallthru
      _
    %p247 = scmp.le.s32.totalorder 1, %s24
    %p248 = scmp.lt.s32.totalorder %s24, 3
    %p249 = pnand %p247, %p248
    %p250 = pneg %p249
    // Predicated region
    $region29: #{_gcn3conv_forward.8} parent=5 // pred_check
      _
    $region30: #{_gcn3conv_forward.8} parent=5 // pred_check_branch
      %252 = sbr.rel (%p249) target = $region32
    $region31: #{_gcn3conv_forward.8} parent=5 // pred_region
      %s253 = ssub.s32 %s24, 1
      %s254 = sshra.s32 %s34, 7
      %s255 = sand.u32 %s34, 127
      %s256 = sadd.s32 %s254, %s33
      %s257 = smul.u32 %s256, 128
      %s258 = sshra.s32 %s34, 7
      %s259 = sand.u32 %s34, 127
      %s260 = sadd.s32 %s257, %s259
      %s261 = sld [smem:[#allocation4 + %s260]]
      %s262 = smul.u32 16, %s33
      %s263 = smul.u32 2, %s261
      %p264 = scmp.lt.s32.totalorder %s262, 31
      %s265 = scalar_select %p264, %s262, 31
      %p266 = scmp.lt.s32.totalorder %s263, 1
      %s267 = scalar_select %p266, %s263, 1
      %s268 = smul.addr %s265, 2
      %s269 = sadd.s32 %s267, %s268
      %s270 = smul.addr %s269, 4
      %s271 = scalar_lea.vmem %s2, %s270
      %p272 = pneg %p80
      %p273 = pneg %p77
      %s274 = sshra.s32 %s34, 7
      %s275 = sand.u32 %s34, 127
      %s276 = sadd.s32 %s274, %s33
      %s277 = smul.u32 %s276, 128
      %s278 = sshra.s32 %s34, 7
      %s279 = sand.u32 %s34, 127
      %s280 = sadd.s32 %s277, %s279
      %s281 = sld [smem:[#allocation4 + %s280]]
      %s282 = smul.u32 32, %s281
      %p283 = scmp.lt.s32.totalorder %s282, 31
      %s284 = scalar_select %p283, %s282, 31
      %s285 = smul.addr %s284, 4
      %s286 = scalar_lea.vmem %s3, %s285
      %p287 = pneg %p122
      %p288 = pneg %p119
      %p289 = pneg %p143
      %p290 = pneg %p140
      %p291 = pneg %p169
      %p292 = pneg %p166
      %s293 = smul.u32 16, %s33
      %p294 = scmp.lt.s32.totalorder %s293, 31
      %s295 = scalar_select %p294, %s293, 31
      %s296 = smul.addr %s295, 4
      %s297 = scalar_lea.vmem %s5, %s296
      %s298 = sshra.s32 %s34, 7
      %s299 = sand.u32 %s34, 127
      %s300 = sadd.s32 %s298, %s33
      %s301 = smul.u32 %s300, 128
      %s302 = sshra.s32 %s34, 7
      %s303 = sand.u32 %s34, 127
      %s304 = sadd.s32 %s301, %s303
      %s305 = sld [smem:[#allocation4 + %s304]]
      %s306 = smul.u32 16, %s33
      %s307 = smul.u32 2, %s305
      %p308 = scmp.lt.s32.totalorder %s306, 31
      %s309 = scalar_select %p308, %s306, 31
      %p310 = scmp.lt.s32.totalorder %s307, 1
      %s311 = scalar_select %p310, %s307, 1
      %s312 = smul.addr %s309, 2
      %s313 = sadd.s32 %s311, %s312
      %s314 = smul.addr %s313, 4
      %s315 = scalar_lea.vmem %s2, %s314
      %s316 = sshra.s32 %s34, 7
      %s317 = sand.u32 %s34, 127
      %s318 = sadd.s32 %s316, %s33
      %s319 = smul.u32 %s318, 128
      %s320 = sshra.s32 %s34, 7
      %s321 = sand.u32 %s34, 127
      %s322 = sadd.s32 %s319, %s321
      %s323 = sld [smem:[#allocation4 + %s322]]
      %s324 = smul.u32 16, %s33
      %s325 = smul.u32 2, %s323
      %s326 = sshra.s32 %s34, 7
      %s327 = sand.u32 %s34, 127
      %s328 = sadd.s32 %s326, %s33
      %s329 = smul.u32 %s328, 128
      %s330 = sshra.s32 %s34, 7
      %s331 = sand.u32 %s34, 127
      %s332 = sadd.s32 %s329, %s331
      %s333 = sld [smem:[#allocation4 + %s332]]
      %s334 = smul.u32 32, %s333
      %p335 = scmp.lt.s32.totalorder %s334, 31
      %s336 = scalar_select %p335, %s334, 31
      %s337 = smul.addr %s336, 4
      %s338 = scalar_lea.vmem %s3, %s337
      %s339 = sshra.s32 %s34, 7
      %s340 = sand.u32 %s34, 127
      %s341 = sadd.s32 %s339, %s33
      %s342 = smul.u32 %s341, 128
      %s343 = sshra.s32 %s34, 7
      %s344 = sand.u32 %s34, 127
      %s345 = sadd.s32 %s342, %s344
      %s346 = sld [smem:[#allocation4 + %s345]]
      %s347 = smul.u32 32, %s346
      %s348 = smul.u32 16, %s33
      %p349 = scmp.lt.s32.totalorder %s348, 31
      %s350 = scalar_select %p349, %s348, 31
      %s351 = smul.addr %s350, 4
      %s352 = scalar_lea.vmem %s5, %s351
      %s353 = smul.u32 16, %s33
      %p354 = scmp.eq.s32.totalorder %s34, 0
      // Predicated region
      $region33: #{_gcn3conv_forward.8} parent=31 // pred_check
        %p355 = pneg %p354
      $region34: #{_gcn3conv_forward.8} parent=31 // pred_check_branch
        %357 = sbr.rel (%p355) target = $region36
      $region35: #{_gcn3conv_forward.8} parent=31 // pred_region
        %358 = vst [vmem:[#allocation2] sm:$0xff] 0.0
        %359 = vst [vmem:[#allocation2 + $0x8] sm:$0xff] 0.0
        %360 = vst [vmem:[#allocation2 + $0x10] sm:$0xff] 0.0
        %361 = vst [vmem:[#allocation2 + $0x18] sm:$0xff] 0.0
        %362 = vst [vmem:[#allocation2 + $0x20] sm:$0xff] 0.0
        %363 = vst [vmem:[#allocation2 + $0x28] sm:$0xff] 0.0
        %364 = vst [vmem:[#allocation2 + $0x30] sm:$0xff] 0.0
        %365 = vst [vmem:[#allocation2 + $0x38] sm:$0xff] 0.0
        %366 = vst [vmem:[#allocation2 + $0x40] sm:$0xff] 0.0
        %367 = vst [vmem:[#allocation2 + $0x48] sm:$0xff] 0.0
        %368 = vst [vmem:[#allocation2 + $0x50] sm:$0xff] 0.0
        %369 = vst [vmem:[#allocation2 + $0x58] sm:$0xff] 0.0
        %370 = vst [vmem:[#allocation2 + $0x60] sm:$0xff] 0.0
        %371 = vst [vmem:[#allocation2 + $0x68] sm:$0xff] 0.0
        %372 = vst [vmem:[#allocation2 + $0x70] sm:$0xff] 0.0
        %373 = vst [vmem:[#allocation2 + $0x78] sm:$0xff] 0.0
      $region36: #{_gcn3conv_forward.8} parent=31 // pred_fallthru
        _
      %s374 = sshra.s32 %s34, 7
      %s375 = sand.u32 %s34, 127
      %s376 = sadd.s32 %s374, %s33
      %s377 = smul.u32 %s376, 128
      %s378 = sshra.s32 %s34, 7
      %s379 = sand.u32 %s34, 127
      %s380 = sadd.s32 %s377, %s379
      %s381 = sld [smem:[#allocation5 + %s380]]
      %p382 = scmp.ne.s32.totalorder %s381, 0
      // Predicated region
      $region37: #{_gcn3conv_forward.8} parent=31 // pred_check
        %p383 = pneg %p382
      $region38: #{_gcn3conv_forward.8} parent=31 // pred_check_branch
        %385 = sbr.rel (%p383) target = $region40
      $region39: #{_gcn3conv_forward.8} parent=31 // pred_region
        %v386 = vld [vmem:[#allocation2] sm:$0xff]
        %v387 = vld [vmem:[#allocation2 + $0x8] sm:$0xff]
        %v388 = vld [vmem:[#allocation2 + $0x10] sm:$0xff]
        %v389 = vld [vmem:[#allocation2 + $0x18] sm:$0xff]
        %v390 = vld [vmem:[#allocation2 + $0x20] sm:$0xff]
        %v391 = vld [vmem:[#allocation2 + $0x28] sm:$0xff]
        %v392 = vld [vmem:[#allocation2 + $0x30] sm:$0xff]
        %v393 = vld [vmem:[#allocation2 + $0x38] sm:$0xff]
        %v394 = vld [vmem:[#allocation2 + $0x40] sm:$0xff]
        %v395 = vld [vmem:[#allocation2 + $0x48] sm:$0xff]
        %v396 = vld [vmem:[#allocation2 + $0x50] sm:$0xff]
        %v397 = vld [vmem:[#allocation2 + $0x58] sm:$0xff]
        %v398 = vld [vmem:[#allocation2 + $0x60] sm:$0xff]
        %v399 = vld [vmem:[#allocation2 + $0x68] sm:$0xff]
        %v400 = vld [vmem:[#allocation2 + $0x70] sm:$0xff]
        %v401 = vld [vmem:[#allocation2 + $0x78] sm:$0xff]
        %v402 = vld [vmem:[%s315] sm:$0xff]
        %v403 = vld [vmem:[%s315 + $0x8] sm:$0xff]
        %v404 = vld [vmem:[%s315 + $0x10] sm:$0xff]
        %v405 = vld [vmem:[%s315 + $0x18] sm:$0xff]
        %v406 = vld [vmem:[%s315 + $0x20] sm:$0xff]
        %v407 = vld [vmem:[%s315 + $0x28] sm:$0xff]
        %v408 = vld [vmem:[%s315 + $0x30] sm:$0xff]
        %v409 = vld [vmem:[%s315 + $0x38] sm:$0xff]
        %v410 = vld [vmem:[%s315 + $0x40] sm:$0xff]
        %v411 = vld [vmem:[%s315 + $0x48] sm:$0xff]
        %v412 = vld [vmem:[%s315 + $0x50] sm:$0xff]
        %v413 = vld [vmem:[%s315 + $0x58] sm:$0xff]
        %v414 = vld [vmem:[%s315 + $0x60] sm:$0xff]
        %v415 = vld [vmem:[%s315 + $0x68] sm:$0xff]
        %v416 = vld [vmem:[%s315 + $0x70] sm:$0xff]
        %v417 = vld [vmem:[%s315 + $0x78] sm:$0xff]
        %v418 = vld [vmem:[%s338] sm:$0xf]
        %v419 = vld [vmem:[%s338 + $0x4] sm:$0xf]
        %v420 = vld [vmem:[%s338 + $0x8] sm:$0xf]
        %v421 = vld [vmem:[%s338 + $0xc] sm:$0xf]
        %v422 = vld [vmem:[%s338 + $0x10] sm:$0xf]
        %v423 = vld [vmem:[%s338 + $0x14] sm:$0xf]
        %v424 = vld [vmem:[%s338 + $0x18] sm:$0xf]
        %v425 = vld [vmem:[%s338 + $0x1c] sm:$0xf]
        %v426 = vld [vmem:[%s338 + $0x20] sm:$0xf]
        %v427 = vld [vmem:[%s338 + $0x24] sm:$0xf]
        %v428 = vld [vmem:[%s338 + $0x28] sm:$0xf]
        %v429 = vld [vmem:[%s338 + $0x2c] sm:$0xf]
        %v430 = vld [vmem:[%s338 + $0x30] sm:$0xf]
        %v431 = vld [vmem:[%s338 + $0x34] sm:$0xf]
        %v432 = vld [vmem:[%s338 + $0x38] sm:$0xf]
        %v433 = vld [vmem:[%s338 + $0x3c] sm:$0xf]
        %v434 = vld [vmem:[%s338 + $0x40] sm:$0xf]
        %v435 = vld [vmem:[%s338 + $0x44] sm:$0xf]
        %v436 = vld [vmem:[%s338 + $0x48] sm:$0xf]
        %v437 = vld [vmem:[%s338 + $0x4c] sm:$0xf]
        %v438 = vld [vmem:[%s338 + $0x50] sm:$0xf]
        %v439 = vld [vmem:[%s338 + $0x54] sm:$0xf]
        %v440 = vld [vmem:[%s338 + $0x58] sm:$0xf]
        %v441 = vld [vmem:[%s338 + $0x5c] sm:$0xf]
        %v442 = vld [vmem:[%s338 + $0x60] sm:$0xf]
        %v443 = vld [vmem:[%s338 + $0x64] sm:$0xf]
        %v444 = vld [vmem:[%s338 + $0x68] sm:$0xf]
        %v445 = vld [vmem:[%s338 + $0x6c] sm:$0xf]
        %v446 = vld [vmem:[%s338 + $0x70] sm:$0xf]
        %v447 = vld [vmem:[%s338 + $0x74] sm:$0xf]
        %v448 = vld [vmem:[%s338 + $0x78] sm:$0xf]
        %v449 = vld [vmem:[%s338 + $0x7c] sm:$0xf]
        %v466 = vunpack.c.l.b16 %v402
        %v467 = vunpack.c.h.b16 %v402
        %v468 = vunpack.c.l.b16 %v403
        %v469 = vunpack.c.h.b16 %v403
        %v470 = vunpack.c.l.b16 %v404
        %v471 = vunpack.c.h.b16 %v404
        %v472 = vunpack.c.l.b16 %v405
        %v473 = vunpack.c.h.b16 %v405
        %v474 = vunpack.c.l.b16 %v406
        %v475 = vunpack.c.h.b16 %v406
        %v476 = vunpack.c.l.b16 %v407
        %v477 = vunpack.c.h.b16 %v407
        %v478 = vunpack.c.l.b16 %v408
        %v479 = vunpack.c.h.b16 %v408
        %v480 = vunpack.c.l.b16 %v409
        %v481 = vunpack.c.h.b16 %v409
        %v482 = vunpack.c.l.b16 %v410
        %v483 = vunpack.c.h.b16 %v410
        %v484 = vunpack.c.l.b16 %v411
        %v485 = vunpack.c.h.b16 %v411
        %v486 = vunpack.c.l.b16 %v412
        %v487 = vunpack.c.h.b16 %v412
        %v488 = vunpack.c.l.b16 %v413
        %v489 = vunpack.c.h.b16 %v413
        %v490 = vunpack.c.l.b16 %v414
        %v491 = vunpack.c.h.b16 %v414
        %v492 = vunpack.c.l.b16 %v415
        %v493 = vunpack.c.h.b16 %v415
        %v494 = vunpack.c.l.b16 %v416
        %v495 = vunpack.c.h.b16 %v416
        %v496 = vunpack.c.l.b16 %v417
        %v497 = vunpack.c.h.b16 %v417
        %v498 = vpack.c.b16 %v468, %v466
        %v499 = vpack.c.b16 %v469, %v467
        %v500 = vpack.c.b16 %v472, %v470
        %v501 = vpack.c.b16 %v473, %v471
        %v502 = vpack.c.b16 %v476, %v474
        %v503 = vpack.c.b16 %v477, %v475
        %v504 = vpack.c.b16 %v480, %v478
        %v505 = vpack.c.b16 %v481, %v479
        %v506 = vpack.c.b16 %v484, %v482
        %v507 = vpack.c.b16 %v485, %v483
        %v508 = vpack.c.b16 %v488, %v486
        %v509 = vpack.c.b16 %v489, %v487
        %v510 = vpack.c.b16 %v492, %v490
        %v511 = vpack.c.b16 %v493, %v491
        %v512 = vpack.c.b16 %v496, %v494
        %v513 = vpack.c.b16 %v497, %v495
        %v562 = vunpack.c.l.b16 %v418
        %v563 = vunpack.c.l.b16 %v419
        %v564 = vunpack.c.l.b16 %v420
        %v565 = vunpack.c.l.b16 %v421
        %v566 = vunpack.c.l.b16 %v422
        %v567 = vunpack.c.l.b16 %v423
        %v568 = vunpack.c.l.b16 %v424
        %v569 = vunpack.c.l.b16 %v425
        %v570 = vunpack.c.l.b16 %v426
        %v571 = vunpack.c.l.b16 %v427
        %v572 = vunpack.c.l.b16 %v428
        %v573 = vunpack.c.l.b16 %v429
        %v574 = vunpack.c.l.b16 %v430
        %v575 = vunpack.c.l.b16 %v431
        %v576 = vunpack.c.l.b16 %v432
        %v577 = vunpack.c.l.b16 %v433
        %v578 = vunpack.c.l.b16 %v434
        %v579 = vunpack.c.l.b16 %v435
        %v580 = vunpack.c.l.b16 %v436
        %v581 = vunpack.c.l.b16 %v437
        %v582 = vunpack.c.l.b16 %v438
        %v583 = vunpack.c.l.b16 %v439
        %v584 = vunpack.c.l.b16 %v440
        %v585 = vunpack.c.l.b16 %v441
        %v586 = vunpack.c.l.b16 %v442
        %v587 = vunpack.c.l.b16 %v443
        %v588 = vunpack.c.l.b16 %v444
        %v589 = vunpack.c.l.b16 %v445
        %v590 = vunpack.c.l.b16 %v446
        %v591 = vunpack.c.l.b16 %v447
        %v592 = vunpack.c.l.b16 %v448
        %v593 = vunpack.c.l.b16 %v449
        %v594 = vpack.c.b16 %v563, %v562
        %v595 = vpack.c.b16 %v565, %v564
        %v596 = vpack.c.b16 %v567, %v566
        %v597 = vpack.c.b16 %v569, %v568
        %v598 = vpack.c.b16 %v571, %v570
        %v599 = vpack.c.b16 %v573, %v572
        %v600 = vpack.c.b16 %v575, %v574
        %v601 = vpack.c.b16 %v577, %v576
        %v602 = vpack.c.b16 %v579, %v578
        %v603 = vpack.c.b16 %v581, %v580
        %v604 = vpack.c.b16 %v583, %v582
        %v605 = vpack.c.b16 %v585, %v584
        %v606 = vpack.c.b16 %v587, %v586
        %v607 = vpack.c.b16 %v589, %v588
        %v608 = vpack.c.b16 %v591, %v590
        %v609 = vpack.c.b16 %v593, %v592
        %626 = vmatpush.bf16.msra.mxu0 %v601
        %627 = vmatpush.bf16.msra.mxu0 %v600
        %628 = vmatpush.bf16.msra.mxu0 %v599
        %629 = vmatpush.bf16.msra.mxu0 %v598
        %630 = vmatpush.bf16.msra.mxu0 %v597
        %631 = vmatpush.bf16.msra.mxu0 %v596
        %632 = vmatpush.bf16.msra.mxu0 %v595
        %633 = vmatpush.bf16.msra.mxu0 %v594
        %634 = vmatmul.bf16.gmra.mxu0 %v498
        %v635 = vpop.f32.mrf.mxu0
        %v636 = vadd.f32 0.0, %v635
        %v637 = vpop.f32.mrf.mxu0
        %v638 = vadd.f32 0.0, %v637
        %639 = vmatmul.bf16.gmra.mxu0 %v500
        %v640 = vpop.f32.mrf.mxu0
        %v641 = vadd.f32 0.0, %v640
        %v642 = vpop.f32.mrf.mxu0
        %v643 = vadd.f32 0.0, %v642
        %644 = vmatmul.bf16.gmra.mxu0 %v502
        %v645 = vpop.f32.mrf.mxu0
        %v646 = vadd.f32 0.0, %v645
        %v647 = vpop.f32.mrf.mxu0
        %v648 = vadd.f32 0.0, %v647
        %649 = vmatmul.bf16.gmra.mxu0 %v504
        %v650 = vpop.f32.mrf.mxu0
        %v651 = vadd.f32 0.0, %v650
        %v652 = vpop.f32.mrf.mxu0
        %v653 = vadd.f32 0.0, %v652
        %654 = vmatmul.bf16.gmra.mxu0 %v506
        %v655 = vpop.f32.mrf.mxu0
        %v656 = vadd.f32 0.0, %v655
        %v657 = vpop.f32.mrf.mxu0
        %v658 = vadd.f32 0.0, %v657
        %659 = vmatmul.bf16.gmra.mxu0 %v508
        %v660 = vpop.f32.mrf.mxu0
        %v661 = vadd.f32 0.0, %v660
        %v662 = vpop.f32.mrf.mxu0
        %v663 = vadd.f32 0.0, %v662
        %664 = vmatmul.bf16.gmra.mxu0 %v510
        %v665 = vpop.f32.mrf.mxu0
        %v666 = vadd.f32 0.0, %v665
        %v667 = vpop.f32.mrf.mxu0
        %v668 = vadd.f32 0.0, %v667
        %669 = vmatmul.bf16.gmra.mxu0 %v512
        %v670 = vpop.f32.mrf.mxu0
        %v671 = vadd.f32 0.0, %v670
        %v672 = vpop.f32.mrf.mxu0
        %v673 = vadd.f32 0.0, %v672
        %674 = vdwg.mxu0
        %675 = vmatpush.bf16.msra.mxu0 %v609
        %676 = vmatpush.bf16.msra.mxu0 %v608
        %677 = vmatpush.bf16.msra.mxu0 %v607
        %678 = vmatpush.bf16.msra.mxu0 %v606
        %679 = vmatpush.bf16.msra.mxu0 %v605
        %680 = vmatpush.bf16.msra.mxu0 %v604
        %681 = vmatpush.bf16.msra.mxu0 %v603
        %682 = vmatpush.bf16.msra.mxu0 %v602
        %683 = vmatmul.bf16.gmra.mxu0 %v499
        %v684 = vpop.f32.mrf.mxu0
        %v685 = vadd.f32 %v636, %v684
        %v686 = vpop.f32.mrf.mxu0
        %v687 = vadd.f32 %v638, %v686
        %688 = vmatmul.bf16.gmra.mxu0 %v501
        %v689 = vpop.f32.mrf.mxu0
        %v690 = vadd.f32 %v641, %v689
        %v691 = vpop.f32.mrf.mxu0
        %v692 = vadd.f32 %v643, %v691
        %693 = vmatmul.bf16.gmra.mxu0 %v503
        %v694 = vpop.f32.mrf.mxu0
        %v695 = vadd.f32 %v646, %v694
        %v696 = vpop.f32.mrf.mxu0
        %v697 = vadd.f32 %v648, %v696
        %698 = vmatmul.bf16.gmra.mxu0 %v505
        %v699 = vpop.f32.mrf.mxu0
        %v700 = vadd.f32 %v651, %v699
        %v701 = vpop.f32.mrf.mxu0
        %v702 = vadd.f32 %v653, %v701
        %703 = vmatmul.bf16.gmra.mxu0 %v507
        %v704 = vpop.f32.mrf.mxu0
        %v705 = vadd.f32 %v656, %v704
        %v706 = vpop.f32.mrf.mxu0
        %v707 = vadd.f32 %v658, %v706
        %708 = vmatmul.bf16.gmra.mxu0 %v509
        %v709 = vpop.f32.mrf.mxu0
        %v710 = vadd.f32 %v661, %v709
        %v711 = vpop.f32.mrf.mxu0
        %v712 = vadd.f32 %v663, %v711
        %713 = vmatmul.bf16.gmra.mxu0 %v511
        %v714 = vpop.f32.mrf.mxu0
        %v715 = vadd.f32 %v666, %v714
        %v716 = vpop.f32.mrf.mxu0
        %v717 = vadd.f32 %v668, %v716
        %718 = vmatmul.bf16.gmra.mxu0 %v513
        %v719 = vpop.f32.mrf.mxu0
        %v720 = vadd.f32 %v671, %v719
        %v721 = vpop.f32.mrf.mxu0
        %v722 = vadd.f32 %v673, %v721
        %723 = vdwg.mxu0
        %v724 = vadd.f32 %v386, %v685
        %v725 = vadd.f32 %v387, %v687
        %v726 = vadd.f32 %v388, %v690
        %v727 = vadd.f32 %v389, %v692
        %v728 = vadd.f32 %v390, %v695
        %v729 = vadd.f32 %v391, %v697
        %v730 = vadd.f32 %v392, %v700
        %v731 = vadd.f32 %v393, %v702
        %v732 = vadd.f32 %v394, %v705
        %v733 = vadd.f32 %v395, %v707
        %v734 = vadd.f32 %v396, %v710
        %v735 = vadd.f32 %v397, %v712
        %v736 = vadd.f32 %v398, %v715
        %v737 = vadd.f32 %v399, %v717
        %v738 = vadd.f32 %v400, %v720
        %v739 = vadd.f32 %v401, %v722
        %740 = vst [vmem:[#allocation2] sm:$0xff] %v724
        %741 = vst [vmem:[#allocation2 + $0x8] sm:$0xff] %v725
        %742 = vst [vmem:[#allocation2 + $0x10] sm:$0xff] %v726
        %743 = vst [vmem:[#allocation2 + $0x18] sm:$0xff] %v727
        %744 = vst [vmem:[#allocation2 + $0x20] sm:$0xff] %v728
        %745 = vst [vmem:[#allocation2 + $0x28] sm:$0xff] %v729
        %746 = vst [vmem:[#allocation2 + $0x30] sm:$0xff] %v730
        %747 = vst [vmem:[#allocation2 + $0x38] sm:$0xff] %v731
        %748 = vst [vmem:[#allocation2 + $0x40] sm:$0xff] %v732
        %749 = vst [vmem:[#allocation2 + $0x48] sm:$0xff] %v733
        %750 = vst [vmem:[#allocation2 + $0x50] sm:$0xff] %v734
        %751 = vst [vmem:[#allocation2 + $0x58] sm:$0xff] %v735
        %752 = vst [vmem:[#allocation2 + $0x60] sm:$0xff] %v736
        %753 = vst [vmem:[#allocation2 + $0x68] sm:$0xff] %v737
        %754 = vst [vmem:[#allocation2 + $0x70] sm:$0xff] %v738
        %755 = vst [vmem:[#allocation2 + $0x78] sm:$0xff] %v739
      $region40: #{_gcn3conv_forward.8} parent=31 // pred_fallthru
        _
      // Predicated region
      $region41: #{_gcn3conv_forward.8} parent=31 // pred_check
        %p756 = pneg %p354
      $region42: #{_gcn3conv_forward.8} parent=31 // pred_check_branch
        %758 = sbr.rel (%p756) target = $region44
      $region43: #{_gcn3conv_forward.8} parent=31 // pred_region
        %v759 = vld [vmem:[#allocation2] sm:$0xff]
        %v760 = vld [vmem:[#allocation2 + $0x8] sm:$0xff]
        %v761 = vld [vmem:[#allocation2 + $0x10] sm:$0xff]
        %v762 = vld [vmem:[#allocation2 + $0x18] sm:$0xff]
        %v763 = vld [vmem:[#allocation2 + $0x20] sm:$0xff]
        %v764 = vld [vmem:[#allocation2 + $0x28] sm:$0xff]
        %v765 = vld [vmem:[#allocation2 + $0x30] sm:$0xff]
        %v766 = vld [vmem:[#allocation2 + $0x38] sm:$0xff]
        %v767 = vld [vmem:[#allocation2 + $0x40] sm:$0xff]
        %v768 = vld [vmem:[#allocation2 + $0x48] sm:$0xff]
        %v769 = vld [vmem:[#allocation2 + $0x50] sm:$0xff]
        %v770 = vld [vmem:[#allocation2 + $0x58] sm:$0xff]
        %v771 = vld [vmem:[#allocation2 + $0x60] sm:$0xff]
        %v772 = vld [vmem:[#allocation2 + $0x68] sm:$0xff]
        %v773 = vld [vmem:[#allocation2 + $0x70] sm:$0xff]
        %v774 = vld [vmem:[#allocation2 + $0x78] sm:$0xff]
        %v775 = vld [vmem:[%s4] sm:$0x1]
        %v777 = vperm.slane %v775, 0
        %v779 = vadd.f32 %v759, %v777
        %v780 = vadd.f32 %v760, %v777
        %v781 = vadd.f32 %v761, %v777
        %v782 = vadd.f32 %v762, %v777
        %v783 = vadd.f32 %v763, %v777
        %v784 = vadd.f32 %v764, %v777
        %v785 = vadd.f32 %v765, %v777
        %v786 = vadd.f32 %v766, %v777
        %v787 = vadd.f32 %v767, %v777
        %v788 = vadd.f32 %v768, %v777
        %v789 = vadd.f32 %v769, %v777
        %v790 = vadd.f32 %v770, %v777
        %v791 = vadd.f32 %v771, %v777
        %v792 = vadd.f32 %v772, %v777
        %v793 = vadd.f32 %v773, %v777
        %v794 = vadd.f32 %v774, %v777
        %v795 = vmax.f32 %v779, 0.0
        %v796 = vmax.f32 %v780, 0.0
        %v797 = vmax.f32 %v781, 0.0
        %v798 = vmax.f32 %v782, 0.0
        %v799 = vmax.f32 %v783, 0.0
        %v800 = vmax.f32 %v784, 0.0
        %v801 = vmax.f32 %v785, 0.0
        %v802 = vmax.f32 %v786, 0.0
        %v803 = vmax.f32 %v787, 0.0
        %v804 = vmax.f32 %v788, 0.0
        %v805 = vmax.f32 %v789, 0.0
        %v806 = vmax.f32 %v790, 0.0
        %v807 = vmax.f32 %v791, 0.0
        %v808 = vmax.f32 %v792, 0.0
        %v809 = vmax.f32 %v793, 0.0
        %v810 = vmax.f32 %v794, 0.0
        %v811 = vpack.c.bf16 %v795, %v795
        %v812 = vpack.c.bf16 %v796, %v796
        %v813 = vpack.c.bf16 %v797, %v797
        %v814 = vpack.c.bf16 %v798, %v798
        %v815 = vpack.c.bf16 %v799, %v799
        %v816 = vpack.c.bf16 %v800, %v800
        %v817 = vpack.c.bf16 %v801, %v801
        %v818 = vpack.c.bf16 %v802, %v802
        %v819 = vpack.c.bf16 %v803, %v803
        %v820 = vpack.c.bf16 %v804, %v804
        %v821 = vpack.c.bf16 %v805, %v805
        %v822 = vpack.c.bf16 %v806, %v806
        %v823 = vpack.c.bf16 %v807, %v807
        %v824 = vpack.c.bf16 %v808, %v808
        %v825 = vpack.c.bf16 %v809, %v809
        %v826 = vpack.c.bf16 %v810, %v810
        %827 = vst [vmem:[%s352] sm:$0xf] %v811
        %828 = vst [vmem:[%s352 + $0x4] sm:$0xf] %v812
        %829 = vst [vmem:[%s352 + $0x8] sm:$0xf] %v813
        %830 = vst [vmem:[%s352 + $0xc] sm:$0xf] %v814
        %831 = vst [vmem:[%s352 + $0x10] sm:$0xf] %v815
        %832 = vst [vmem:[%s352 + $0x14] sm:$0xf] %v816
        %833 = vst [vmem:[%s352 + $0x18] sm:$0xf] %v817
        %834 = vst [vmem:[%s352 + $0x1c] sm:$0xf] %v818
        %835 = vst [vmem:[%s352 + $0x20] sm:$0xf] %v819
        %836 = vst [vmem:[%s352 + $0x24] sm:$0xf] %v820
        %837 = vst [vmem:[%s352 + $0x28] sm:$0xf] %v821
        %838 = vst [vmem:[%s352 + $0x2c] sm:$0xf] %v822
        %839 = vst [vmem:[%s352 + $0x30] sm:$0xf] %v823
        %840 = vst [vmem:[%s352 + $0x34] sm:$0xf] %v824
        %841 = vst [vmem:[%s352 + $0x38] sm:$0xf] %v825
        %842 = vst [vmem:[%s352 + $0x3c] sm:$0xf] %v826
      $region44: #{_gcn3conv_forward.8} parent=31 // pred_fallthru
        _
      %s843 = smul.u32 16, %s33
      %p844 = scmp.lt.s32.totalorder %s843, 31
      %s845 = scalar_select %p844, %s843, 31
      %s846 = smul.addr %s845, 4
      %s847 = scalar_lea.vmem %s5, %s846
      // Predicated region
      $region45: #{_gcn3conv_forward.8} parent=31 // pred_check
        %p848 = pneg %p166
      $region46: #{_gcn3conv_forward.8} parent=31 // pred_check_branch
        %850 = sbr.rel (%p848) target = $region48
      $region47: #{_gcn3conv_forward.8} parent=31 // pred_region
        %s851 = smul.u32 16, %s33
      $region48: #{_gcn3conv_forward.8} parent=31 // pred_fallthru
        _
    $region32: #{_gcn3conv_forward.8} parent=5 // pred_fallthru
      _
    %p852 = scmp.le.s32.totalorder 2, %s24
    // Predicated region
    $region49: #{_gcn3conv_forward.8} parent=5 // pred_check
      %p853 = pneg %p852
    $region50: #{_gcn3conv_forward.8} parent=5 // pred_check_branch
      %855 = sbr.rel (%p853) target = $region52
    $region51: #{_gcn3conv_forward.8} parent=5 // pred_region
      %s856 = ssub.s32 %s24, 2
      // Predicated region
      $region53: #{_gcn3conv_forward.8} parent=51 // pred_check
        %p857 = pneg %p172
      $region54: #{_gcn3conv_forward.8} parent=51 // pred_check_branch
        %859 = sbr.rel (%p857) target = $region56
      $region55: #{_gcn3conv_forward.8} parent=51 // pred_region
        %s860 = smul.u32 16, %s35
        %p861 = scmp.lt.s32.totalorder %s860, 31
        %s862 = scalar_select %p861, %s860, 31
        %s863 = smul.addr %s862, 4
        %s864 = scalar_lea.vmem %s5, %s863
      $region56: #{_gcn3conv_forward.8} parent=51 // pred_fallthru
        _
    $region52: #{_gcn3conv_forward.8} parent=5 // pred_fallthru
      _
  $region6: #{_gcn3conv_forward.8} parent=0 // loop_footer
    %s28 = sadd.s32 1, %s24
  $region7: #{_gcn3conv_forward.8} parent=0 // loop_footer_branch
    %23 = sbr.rel target = $region3
  $region8: #{_gcn3conv_forward.8} parent=0 // loop_exit
    _

// kernel: _gcn3conv_forward.7
$region0: #{_gcn3conv_forward.7}
  #allocation0 [shape = 'u32[]', space=smem, size = 0x4, offset = 0x4, fixed_abs, tag = 'smem constant byte address 0x4 - core index']
  #allocation1 [shape = 'u32[72,128]{1,0:T(1,128)}', space=vmem, size = 0x9000, scoped, tag = 'internal scratch']
  %s0 = inlined_call_operand.vmem [shape: bf16[256,128], index: 0, kind: input, shape index: {}]
  %s1 = inlined_call_operand.vmem [shape: bf16[128,128], index: 1, kind: input, shape index: {}]
  %s2 = inlined_call_operand.vmem [shape: bf16[256,128], index: 2, kind: output, shape index: {}]
  %s3 = sld [smem:[#allocation0]]
  $region18: #{_gcn3conv_forward.7} parent=0
    _
  %s5 = ssub.s32 1, %s3
  %s6 = scalar_select 0, %s5, %s3
  // Predicated region
  $region2: #{_gcn3conv_forward.7} parent=0 // pred_check
    _
  $region3: #{_gcn3conv_forward.7} parent=0 // pred_check_branch
    %8 = sbr.rel (0) target = $region5
  $region4: #{_gcn3conv_forward.7} parent=0 // pred_region
    _
  $region5: #{_gcn3conv_forward.7} parent=0 // pred_fallthru
    _
  // Predicated region
  $region6: #{_gcn3conv_forward.7} parent=0 // pred_check
    _
  $region7: #{_gcn3conv_forward.7} parent=0 // pred_check_branch
    %10 = sbr.rel (0) target = $region9
  $region8: #{_gcn3conv_forward.7} parent=0 // pred_region
    _
  $region9: #{_gcn3conv_forward.7} parent=0 // pred_fallthru
    _
  %v11 = vld [vmem:[%s0] sm:$0xf]
  %v12 = vld [vmem:[%s0 + $0x4] sm:$0xf]
  %v13 = vld [vmem:[%s0 + $0x8] sm:$0xf]
  %v14 = vld [vmem:[%s0 + $0xc] sm:$0xf]
  %v15 = vld [vmem:[%s0 + $0x10] sm:$0xf]
  %v16 = vld [vmem:[%s0 + $0x14] sm:$0xf]
  %v17 = vld [vmem:[%s0 + $0x18] sm:$0xf]
  %v18 = vld [vmem:[%s0 + $0x1c] sm:$0xf]
  %v19 = vld [vmem:[%s0 + $0x20] sm:$0xf]
  %v20 = vld [vmem:[%s0 + $0x24] sm:$0xf]
  %v21 = vld [vmem:[%s0 + $0x28] sm:$0xf]
  %v22 = vld [vmem:[%s0 + $0x2c] sm:$0xf]
  %v23 = vld [vmem:[%s0 + $0x30] sm:$0xf]
  %v24 = vld [vmem:[%s0 + $0x34] sm:$0xf]
  %v25 = vld [vmem:[%s0 + $0x38] sm:$0xf]
  %v26 = vld [vmem:[%s0 + $0x3c] sm:$0xf]
  %v27 = vld [vmem:[%s0 + $0x40] sm:$0xf]
  %v28 = vld [vmem:[%s0 + $0x44] sm:$0xf]
  %v29 = vld [vmem:[%s0 + $0x48] sm:$0xf]
  %v30 = vld [vmem:[%s0 + $0x4c] sm:$0xf]
  %v31 = vld [vmem:[%s0 + $0x50] sm:$0xf]
  %v32 = vld [vmem:[%s0 + $0x54] sm:$0xf]
  %v33 = vld [vmem:[%s0 + $0x58] sm:$0xf]
  %v34 = vld [vmem:[%s0 + $0x5c] sm:$0xf]
  %v35 = vld [vmem:[%s0 + $0x60] sm:$0xf]
  %v36 = vld [vmem:[%s0 + $0x64] sm:$0xf]
  %v37 = vld [vmem:[%s0 + $0x68] sm:$0xf]
  %v38 = vld [vmem:[%s0 + $0x6c] sm:$0xf]
  %v39 = vld [vmem:[%s0 + $0x70] sm:$0xf]
  %v40 = vld [vmem:[%s0 + $0x74] sm:$0xf]
  %v41 = vld [vmem:[%s0 + $0x78] sm:$0xf]
  %v42 = vld [vmem:[%s0 + $0x7c] sm:$0xf]
  %v43 = vld [vmem:[%s1] sm:$0xf]
  %v44 = vld [vmem:[%s1 + $0x4] sm:$0xf]
  %v45 = vld [vmem:[%s1 + $0x8] sm:$0xf]
  %v46 = vld [vmem:[%s1 + $0xc] sm:$0xf]
  %v47 = vld [vmem:[%s1 + $0x10] sm:$0xf]
  %v48 = vld [vmem:[%s1 + $0x14] sm:$0xf]
  %v49 = vld [vmem:[%s1 + $0x18] sm:$0xf]
  %v50 = vld [vmem:[%s1 + $0x1c] sm:$0xf]
  %v51 = vld [vmem:[%s1 + $0x20] sm:$0xf]
  %v52 = vld [vmem:[%s1 + $0x24] sm:$0xf]
  %v53 = vld [vmem:[%s1 + $0x28] sm:$0xf]
  %v54 = vld [vmem:[%s1 + $0x2c] sm:$0xf]
  %v55 = vld [vmem:[%s1 + $0x30] sm:$0xf]
  %v56 = vld [vmem:[%s1 + $0x34] sm:$0xf]
  %v57 = vld [vmem:[%s1 + $0x38] sm:$0xf]
  %v58 = vld [vmem:[%s1 + $0x3c] sm:$0xf]
  %v91 = vunpack.c.l.b16 %v11
  %v92 = vunpack.c.l.b16 %v12
  %v93 = vunpack.c.l.b16 %v13
  %v94 = vunpack.c.l.b16 %v14
  %v95 = vunpack.c.l.b16 %v15
  %v96 = vunpack.c.l.b16 %v16
  %v97 = vunpack.c.l.b16 %v17
  %v98 = vunpack.c.l.b16 %v18
  %v99 = vunpack.c.l.b16 %v19
  %v100 = vunpack.c.l.b16 %v20
  %v101 = vunpack.c.l.b16 %v21
  %v102 = vunpack.c.l.b16 %v22
  %v103 = vunpack.c.l.b16 %v23
  %v104 = vunpack.c.l.b16 %v24
  %v105 = vunpack.c.l.b16 %v25
  %v106 = vunpack.c.l.b16 %v26
  %v107 = vunpack.c.l.b16 %v27
  %v108 = vunpack.c.l.b16 %v28
  %v109 = vunpack.c.l.b16 %v29
  %v110 = vunpack.c.l.b16 %v30
  %v111 = vunpack.c.l.b16 %v31
  %v112 = vunpack.c.l.b16 %v32
  %v113 = vunpack.c.l.b16 %v33
  %v114 = vunpack.c.l.b16 %v34
  %v115 = vunpack.c.l.b16 %v35
  %v116 = vunpack.c.l.b16 %v36
  %v117 = vunpack.c.l.b16 %v37
  %v118 = vunpack.c.l.b16 %v38
  %v119 = vunpack.c.l.b16 %v39
  %v120 = vunpack.c.l.b16 %v40
  %v121 = vunpack.c.l.b16 %v41
  %v122 = vunpack.c.l.b16 %v42
  %v123 = vpack.c.b16 %v92, %v91
  %v124 = vpack.c.b16 %v94, %v93
  %v125 = vpack.c.b16 %v96, %v95
  %v126 = vpack.c.b16 %v98, %v97
  %v127 = vpack.c.b16 %v100, %v99
  %v128 = vpack.c.b16 %v102, %v101
  %v129 = vpack.c.b16 %v104, %v103
  %v130 = vpack.c.b16 %v106, %v105
  %v131 = vpack.c.b16 %v108, %v107
  %v132 = vpack.c.b16 %v110, %v109
  %v133 = vpack.c.b16 %v112, %v111
  %v134 = vpack.c.b16 %v114, %v113
  %v135 = vpack.c.b16 %v116, %v115
  %v136 = vpack.c.b16 %v118, %v117
  %v137 = vpack.c.b16 %v120, %v119
  %v138 = vpack.c.b16 %v122, %v121
  %v171 = vunpack.c.l.b16 %v43
  %v172 = vunpack.c.l.b16 %v44
  %v173 = vunpack.c.l.b16 %v45
  %v174 = vunpack.c.l.b16 %v46
  %v175 = vunpack.c.l.b16 %v47
  %v176 = vunpack.c.l.b16 %v48
  %v177 = vunpack.c.l.b16 %v49
  %v178 = vunpack.c.l.b16 %v50
  %v179 = vunpack.c.l.b16 %v51
  %v180 = vunpack.c.l.b16 %v52
  %v181 = vunpack.c.l.b16 %v53
  %v182 = vunpack.c.l.b16 %v54
  %v183 = vunpack.c.l.b16 %v55
  %v184 = vunpack.c.l.b16 %v56
  %v185 = vunpack.c.l.b16 %v57
  %v186 = vunpack.c.l.b16 %v58
  %v187 = vpack.c.b16 %v172, %v171
  %v188 = vpack.c.b16 %v174, %v173
  %v189 = vpack.c.b16 %v176, %v175
  %v190 = vpack.c.b16 %v178, %v177
  %v191 = vpack.c.b16 %v180, %v179
  %v192 = vpack.c.b16 %v182, %v181
  %v193 = vpack.c.b16 %v184, %v183
  %v194 = vpack.c.b16 %v186, %v185
  %203 = vmatpush.bf16.msra.mxu0 %v194
  %204 = vmatpush.bf16.msra.mxu0 %v193
  %205 = vmatpush.bf16.msra.mxu0 %v192
  %206 = vmatpush.bf16.msra.mxu0 %v191
  %207 = vmatpush.bf16.msra.mxu0 %v190
  %208 = vmatpush.bf16.msra.mxu0 %v189
  %209 = vmatpush.bf16.msra.mxu0 %v188
  %210 = vmatpush.bf16.msra.mxu0 %v187
  %211 = vmatmul.bf16.gmra.mxu0 %v123
  %v212 = vpop.f32.mrf.mxu0
  %v213 = vadd.f32 0.0, %v212
  %v214 = vpop.f32.mrf.mxu0
  %v215 = vadd.f32 0.0, %v214
  %216 = vmatmul.bf16.gmra.mxu0 %v124
  %v217 = vpop.f32.mrf.mxu0
  %v218 = vadd.f32 0.0, %v217
  %v219 = vpop.f32.mrf.mxu0
  %v220 = vadd.f32 0.0, %v219
  %221 = vmatmul.bf16.gmra.mxu0 %v125
  %v222 = vpop.f32.mrf.mxu0
  %v223 = vadd.f32 0.0, %v222
  %v224 = vpop.f32.mrf.mxu0
  %v225 = vadd.f32 0.0, %v224
  %226 = vmatmul.bf16.gmra.mxu0 %v126
  %v227 = vpop.f32.mrf.mxu0
  %v228 = vadd.f32 0.0, %v227
  %v229 = vpop.f32.mrf.mxu0
  %v230 = vadd.f32 0.0, %v229
  %231 = vmatmul.bf16.gmra.mxu0 %v127
  %v232 = vpop.f32.mrf.mxu0
  %v233 = vadd.f32 0.0, %v232
  %v234 = vpop.f32.mrf.mxu0
  %v235 = vadd.f32 0.0, %v234
  %236 = vmatmul.bf16.gmra.mxu0 %v128
  %v237 = vpop.f32.mrf.mxu0
  %v238 = vadd.f32 0.0, %v237
  %v239 = vpop.f32.mrf.mxu0
  %v240 = vadd.f32 0.0, %v239
  %241 = vmatmul.bf16.gmra.mxu0 %v129
  %v242 = vpop.f32.mrf.mxu0
  %v243 = vadd.f32 0.0, %v242
  %v244 = vpop.f32.mrf.mxu0
  %v245 = vadd.f32 0.0, %v244
  %246 = vmatmul.bf16.gmra.mxu0 %v130
  %v247 = vpop.f32.mrf.mxu0
  %v248 = vadd.f32 0.0, %v247
  %v249 = vpop.f32.mrf.mxu0
  %v250 = vadd.f32 0.0, %v249
  %251 = vmatmul.bf16.gmra.mxu0 %v131
  %v252 = vpop.f32.mrf.mxu0
  %v253 = vadd.f32 0.0, %v252
  %v254 = vpop.f32.mrf.mxu0
  %v255 = vadd.f32 0.0, %v254
  %256 = vmatmul.bf16.gmra.mxu0 %v132
  %v257 = vpop.f32.mrf.mxu0
  %v258 = vadd.f32 0.0, %v257
  %v259 = vpop.f32.mrf.mxu0
  %v260 = vadd.f32 0.0, %v259
  %261 = vmatmul.bf16.gmra.mxu0 %v133
  %v262 = vpop.f32.mrf.mxu0
  %v263 = vadd.f32 0.0, %v262
  %v264 = vpop.f32.mrf.mxu0
  %v265 = vadd.f32 0.0, %v264
  %266 = vmatmul.bf16.gmra.mxu0 %v134
  %v267 = vpop.f32.mrf.mxu0
  %v268 = vadd.f32 0.0, %v267
  %v269 = vpop.f32.mrf.mxu0
  %v270 = vadd.f32 0.0, %v269
  %271 = vmatmul.bf16.gmra.mxu0 %v135
  %v272 = vpop.f32.mrf.mxu0
  %v273 = vadd.f32 0.0, %v272
  %v274 = vpop.f32.mrf.mxu0
  %v275 = vadd.f32 0.0, %v274
  %276 = vmatmul.bf16.gmra.mxu0 %v136
  %v277 = vpop.f32.mrf.mxu0
  %v278 = vadd.f32 0.0, %v277
  %v279 = vpop.f32.mrf.mxu0
  %v280 = vadd.f32 0.0, %v279
  %281 = vmatmul.bf16.gmra.mxu0 %v137
  %v282 = vpop.f32.mrf.mxu0
  %v283 = vadd.f32 0.0, %v282
  %v284 = vpop.f32.mrf.mxu0
  %v285 = vadd.f32 0.0, %v284
  %286 = vmatmul.bf16.gmra.mxu0 %v138
  %v287 = vpop.f32.mrf.mxu0
  %v288 = vadd.f32 0.0, %v287
  %v289 = vpop.f32.mrf.mxu0
  %v290 = vadd.f32 0.0, %v289
  %291 = vdwg.mxu0
  %v292 = vpack.c.bf16 %v213, %v213
  %v293 = vpack.c.bf16 %v215, %v215
  %v294 = vpack.c.bf16 %v218, %v218
  %v295 = vpack.c.bf16 %v220, %v220
  %v296 = vpack.c.bf16 %v223, %v223
  %v297 = vpack.c.bf16 %v225, %v225
  %v298 = vpack.c.bf16 %v228, %v228
  %v299 = vpack.c.bf16 %v230, %v230
  %v300 = vpack.c.bf16 %v233, %v233
  %v301 = vpack.c.bf16 %v235, %v235
  %v302 = vpack.c.bf16 %v238, %v238
  %v303 = vpack.c.bf16 %v240, %v240
  %v304 = vpack.c.bf16 %v243, %v243
  %v305 = vpack.c.bf16 %v245, %v245
  %v306 = vpack.c.bf16 %v248, %v248
  %v307 = vpack.c.bf16 %v250, %v250
  %v308 = vpack.c.bf16 %v253, %v253
  %v309 = vpack.c.bf16 %v255, %v255
  %v310 = vpack.c.bf16 %v258, %v258
  %v311 = vpack.c.bf16 %v260, %v260
  %v312 = vpack.c.bf16 %v263, %v263
  %v313 = vpack.c.bf16 %v265, %v265
  %v314 = vpack.c.bf16 %v268, %v268
  %v315 = vpack.c.bf16 %v270, %v270
  %v316 = vpack.c.bf16 %v273, %v273
  %v317 = vpack.c.bf16 %v275, %v275
  %v318 = vpack.c.bf16 %v278, %v278
  %v319 = vpack.c.bf16 %v280, %v280
  %v320 = vpack.c.bf16 %v283, %v283
  %v321 = vpack.c.bf16 %v285, %v285
  %v322 = vpack.c.bf16 %v288, %v288
  %v323 = vpack.c.bf16 %v290, %v290
  %324 = vst [vmem:[%s2] sm:$0xf] %v292
  %325 = vst [vmem:[%s2 + $0x4] sm:$0xf] %v293
  %326 = vst [vmem:[%s2 + $0x8] sm:$0xf] %v294
  %327 = vst [vmem:[%s2 + $0xc] sm:$0xf] %v295
  %328 = vst [vmem:[%s2 + $0x10] sm:$0xf] %v296
  %329 = vst [vmem:[%s2 + $0x14] sm:$0xf] %v297
  %330 = vst [vmem:[%s2 + $0x18] sm:$0xf] %v298
  %331 = vst [vmem:[%s2 + $0x1c] sm:$0xf] %v299
  %332 = vst [vmem:[%s2 + $0x20] sm:$0xf] %v300
  %333 = vst [vmem:[%s2 + $0x24] sm:$0xf] %v301
  %334 = vst [vmem:[%s2 + $0x28] sm:$0xf] %v302
  %335 = vst [vmem:[%s2 + $0x2c] sm:$0xf] %v303
  %336 = vst [vmem:[%s2 + $0x30] sm:$0xf] %v304
  %337 = vst [vmem:[%s2 + $0x34] sm:$0xf] %v305
  %338 = vst [vmem:[%s2 + $0x38] sm:$0xf] %v306
  %339 = vst [vmem:[%s2 + $0x3c] sm:$0xf] %v307
  %340 = vst [vmem:[%s2 + $0x40] sm:$0xf] %v308
  %341 = vst [vmem:[%s2 + $0x44] sm:$0xf] %v309
  %342 = vst [vmem:[%s2 + $0x48] sm:$0xf] %v310
  %343 = vst [vmem:[%s2 + $0x4c] sm:$0xf] %v311
  %344 = vst [vmem:[%s2 + $0x50] sm:$0xf] %v312
  %345 = vst [vmem:[%s2 + $0x54] sm:$0xf] %v313
  %346 = vst [vmem:[%s2 + $0x58] sm:$0xf] %v314
  %347 = vst [vmem:[%s2 + $0x5c] sm:$0xf] %v315
  %348 = vst [vmem:[%s2 + $0x60] sm:$0xf] %v316
  %349 = vst [vmem:[%s2 + $0x64] sm:$0xf] %v317
  %350 = vst [vmem:[%s2 + $0x68] sm:$0xf] %v318
  %351 = vst [vmem:[%s2 + $0x6c] sm:$0xf] %v319
  %352 = vst [vmem:[%s2 + $0x70] sm:$0xf] %v320
  %353 = vst [vmem:[%s2 + $0x74] sm:$0xf] %v321
  %354 = vst [vmem:[%s2 + $0x78] sm:$0xf] %v322
  %355 = vst [vmem:[%s2 + $0x7c] sm:$0xf] %v323
  // Predicated region
  $region10: #{_gcn3conv_forward.7} parent=0 // pred_check
    _
  $region11: #{_gcn3conv_forward.7} parent=0 // pred_check_branch
    %357 = sbr.rel (0) target = $region13
  $region12: #{_gcn3conv_forward.7} parent=0 // pred_region
    _
  $region13: #{_gcn3conv_forward.7} parent=0 // pred_fallthru
    _
  // Predicated region
  $region14: #{_gcn3conv_forward.7} parent=0 // pred_check
    _
  $region15: #{_gcn3conv_forward.7} parent=0 // pred_check_branch
    %359 = sbr.rel (0) target = $region17
  $region16: #{_gcn3conv_forward.7} parent=0 // pred_region
    _
  $region17: #{_gcn3conv_forward.7} parent=0 // pred_fallthru
    _

// kernel: _gcn3conv_forward.13
$region0: #{_gcn3conv_forward.13}
  #allocation0 [shape = 'u32[]', space=smem, size = 0x4, offset = 0x4, fixed_abs, tag = 'smem constant byte address 0x4 - core index']
  #allocation1 [shape = 'u32[72,128]{1,0:T(1,128)}', space=vmem, size = 0x9000, scoped, tag = 'internal scratch']
  #allocation2 [shape = 'f32[2,128]{1,0:T(2,128)}', space=vmem, size = 0x400, scoped, tag = 'scratch operand']
  %s0 = inlined_call_operand.vmem [shape: bf16[2,256], index: 0, kind: input, shape index: {}]
  %s1 = inlined_call_operand.vmem [shape: bf16[256,128], index: 1, kind: input, shape index: {}]
  %s2 = inlined_call_operand.vmem [shape: bf16[128,16], index: 2, kind: input, shape index: {}]
  %s3 = inlined_call_operand.vmem [shape: f32[1,16], index: 3, kind: input, shape index: {}]
  %s4 = inlined_call_operand.vmem [shape: bf16[16,4], index: 4, kind: input, shape index: {}]
  %s5 = inlined_call_operand.vmem [shape: f32[1,4], index: 5, kind: input, shape index: {}]
  %s6 = inlined_call_operand.hbm [shape: f32[2,4], index: 6, kind: output, shape index: {}]
  %s7 = sld [smem:[#allocation0]]
  $region42: #{_gcn3conv_forward.13} parent=0
    _
  %s9 = ssub.s32 1, %s7
  %s10 = scalar_select 0, %s9, %s7
  $region1: #{_gcn3conv_forward.13} parent=0
    #allocation3 [shape = 'u8[1024]{0}', space=vmem, size = 0x400, scoped, tag = 'output window, operand 0, single buffered']
    #allocation4 [shape = 's32[1]{0}', space=sflag, size = 0x4, scoped, tag = 'scoped memory for _gcn3conv_forward.13']
    %11 = vsyncpa [#allocation4], 0
    // Predicated region
    $region2: #{_gcn3conv_forward.13} parent=1 // pred_check
      _
    $region3: #{_gcn3conv_forward.13} parent=1 // pred_check_branch
      %13 = sbr.rel (0) target = $region5
    $region4: #{_gcn3conv_forward.13} parent=1 // pred_region
      _
    $region5: #{_gcn3conv_forward.13} parent=1 // pred_fallthru
      _
    // Predicated region
    $region6: #{_gcn3conv_forward.13} parent=1 // pred_check
      _
    $region7: #{_gcn3conv_forward.13} parent=1 // pred_check_branch
      %15 = sbr.rel (0) target = $region9
    $region8: #{_gcn3conv_forward.13} parent=1 // pred_region
      _
    $region9: #{_gcn3conv_forward.13} parent=1 // pred_fallthru
      _
    // Predicated region
    $region10: #{_gcn3conv_forward.13} parent=1 // pred_check
      _
    $region11: #{_gcn3conv_forward.13} parent=1 // pred_check_branch
      %17 = sbr.rel (0) target = $region13
    $region12: #{_gcn3conv_forward.13} parent=1 // pred_region
      _
    $region13: #{_gcn3conv_forward.13} parent=1 // pred_fallthru
      _
    // Predicated region
    $region14: #{_gcn3conv_forward.13} parent=1 // pred_check
      _
    $region15: #{_gcn3conv_forward.13} parent=1 // pred_check_branch
      %19 = sbr.rel (0) target = $region17
    $region16: #{_gcn3conv_forward.13} parent=1 // pred_region
      _
    $region17: #{_gcn3conv_forward.13} parent=1 // pred_fallthru
      _
    // Predicated region
    $region18: #{_gcn3conv_forward.13} parent=1 // pred_check
      _
    $region19: #{_gcn3conv_forward.13} parent=1 // pred_check_branch
      %21 = sbr.rel (0) target = $region21
    $region20: #{_gcn3conv_forward.13} parent=1 // pred_region
      _
    $region21: #{_gcn3conv_forward.13} parent=1 // pred_fallthru
      _
    // Predicated region
    $region22: #{_gcn3conv_forward.13} parent=1 // pred_check
      _
    $region23: #{_gcn3conv_forward.13} parent=1 // pred_check_branch
      %23 = sbr.rel (0) target = $region25
    $region24: #{_gcn3conv_forward.13} parent=1 // pred_region
      _
    $region25: #{_gcn3conv_forward.13} parent=1 // pred_fallthru
      _
    %p25 = scmp.eq.s32.totalorder 0, 0
    // Predicated region
    $region26: #{_gcn3conv_forward.13} parent=1 // pred_check
      %p26 = pneg %p25
    $region27: #{_gcn3conv_forward.13} parent=1 // pred_check_branch
      %28 = sbr.rel (%p26) target = $region29
    $region28: #{_gcn3conv_forward.13} parent=1 // pred_region
      %29 = vst [vmem:[#allocation2] sm:$0x3] 0.0
    $region29: #{_gcn3conv_forward.13} parent=1 // pred_fallthru
      _
    %v30 = vld [vmem:[#allocation2] sm:$0x3]
    %v31 = vld [vmem:[%s0] sm:$0x3]
    %v32 = vld [vmem:[%s1] sm:$0xf]
    %v33 = vld [vmem:[%s1 + $0x4] sm:$0xf]
    %v34 = vld [vmem:[%s1 + $0x8] sm:$0xf]
    %v35 = vld [vmem:[%s1 + $0xc] sm:$0xf]
    %v36 = vld [vmem:[%s1 + $0x10] sm:$0xf]
    %v37 = vld [vmem:[%s1 + $0x14] sm:$0xf]
    %v38 = vld [vmem:[%s1 + $0x18] sm:$0xf]
    %v39 = vld [vmem:[%s1 + $0x1c] sm:$0xf]
    %v40 = vld [vmem:[%s1 + $0x20] sm:$0xf]
    %v41 = vld [vmem:[%s1 + $0x24] sm:$0xf]
    %v42 = vld [vmem:[%s1 + $0x28] sm:$0xf]
    %v43 = vld [vmem:[%s1 + $0x2c] sm:$0xf]
    %v44 = vld [vmem:[%s1 + $0x30] sm:$0xf]
    %v45 = vld [vmem:[%s1 + $0x34] sm:$0xf]
    %v46 = vld [vmem:[%s1 + $0x38] sm:$0xf]
    %v47 = vld [vmem:[%s1 + $0x3c] sm:$0xf]
    %v48 = vld [vmem:[%s1 + $0x40] sm:$0xf]
    %v49 = vld [vmem:[%s1 + $0x44] sm:$0xf]
    %v50 = vld [vmem:[%s1 + $0x48] sm:$0xf]
    %v51 = vld [vmem:[%s1 + $0x4c] sm:$0xf]
    %v52 = vld [vmem:[%s1 + $0x50] sm:$0xf]
    %v53 = vld [vmem:[%s1 + $0x54] sm:$0xf]
    %v54 = vld [vmem:[%s1 + $0x58] sm:$0xf]
    %v55 = vld [vmem:[%s1 + $0x5c] sm:$0xf]
    %v56 = vld [vmem:[%s1 + $0x60] sm:$0xf]
    %v57 = vld [vmem:[%s1 + $0x64] sm:$0xf]
    %v58 = vld [vmem:[%s1 + $0x68] sm:$0xf]
    %v59 = vld [vmem:[%s1 + $0x6c] sm:$0xf]
    %v60 = vld [vmem:[%s1 + $0x70] sm:$0xf]
    %v61 = vld [vmem:[%s1 + $0x74] sm:$0xf]
    %v62 = vld [vmem:[%s1 + $0x78] sm:$0xf]
    %v63 = vld [vmem:[%s1 + $0x7c] sm:$0xf]
    %65 = vst [vmem:[#allocation1] ss:$9 sm:$0xff] %v31
    %v66 = vld [vmem:[#allocation1] sm:$0xff]
    %v67 = vld [vmem:[#allocation1 + $0x9] sm:$0xff]
    %v102 = vunpack.c.l.b16 %v32
    %v103 = vunpack.c.l.b16 %v33
    %v104 = vunpack.c.l.b16 %v34
    %v105 = vunpack.c.l.b16 %v35
    %v106 = vunpack.c.l.b16 %v36
    %v107 = vunpack.c.l.b16 %v37
    %v108 = vunpack.c.l.b16 %v38
    %v109 = vunpack.c.l.b16 %v39
    %v110 = vunpack.c.l.b16 %v40
    %v111 = vunpack.c.l.b16 %v41
    %v112 = vunpack.c.l.b16 %v42
    %v113 = vunpack.c.l.b16 %v43
    %v114 = vunpack.c.l.b16 %v44
    %v115 = vunpack.c.l.b16 %v45
    %v116 = vunpack.c.l.b16 %v46
    %v117 = vunpack.c.l.b16 %v47
    %v118 = vunpack.c.l.b16 %v48
    %v119 = vunpack.c.l.b16 %v49
    %v120 = vunpack.c.l.b16 %v50
    %v121 = vunpack.c.l.b16 %v51
    %v122 = vunpack.c.l.b16 %v52
    %v123 = vunpack.c.l.b16 %v53
    %v124 = vunpack.c.l.b16 %v54
    %v125 = vunpack.c.l.b16 %v55
    %v126 = vunpack.c.l.b16 %v56
    %v127 = vunpack.c.l.b16 %v57
    %v128 = vunpack.c.l.b16 %v58
    %v129 = vunpack.c.l.b16 %v59
    %v130 = vunpack.c.l.b16 %v60
    %v131 = vunpack.c.l.b16 %v61
    %v132 = vunpack.c.l.b16 %v62
    %v133 = vunpack.c.l.b16 %v63
    %v134 = vpack.c.b16 %v103, %v102
    %v135 = vpack.c.b16 %v105, %v104
    %v136 = vpack.c.b16 %v107, %v106
    %v137 = vpack.c.b16 %v109, %v108
    %v138 = vpack.c.b16 %v111, %v110
    %v139 = vpack.c.b16 %v113, %v112
    %v140 = vpack.c.b16 %v115, %v114
    %v141 = vpack.c.b16 %v117, %v116
    %v142 = vpack.c.b16 %v119, %v118
    %v143 = vpack.c.b16 %v121, %v120
    %v144 = vpack.c.b16 %v123, %v122
    %v145 = vpack.c.b16 %v125, %v124
    %v146 = vpack.c.b16 %v127, %v126
    %v147 = vpack.c.b16 %v129, %v128
    %v148 = vpack.c.b16 %v131, %v130
    %v149 = vpack.c.b16 %v133, %v132
    %166 = vmatpush.bf16.msra.mxu0 %v141
    %167 = vmatpush.bf16.msra.mxu0 %v140
    %168 = vmatpush.bf16.msra.mxu0 %v139
    %169 = vmatpush.bf16.msra.mxu0 %v138
    %170 = vmatpush.bf16.msra.mxu0 %v137
    %171 = vmatpush.bf16.msra.mxu0 %v136
    %172 = vmatpush.bf16.msra.mxu0 %v135
    %173 = vmatpush.bf16.msra.mxu0 %v134
    %174 = vmatmul.bf16.gmra.mxu0 %v66
    %v175 = vpop.f32.mrf.mxu0
    %v176 = vadd.f32 0.0, %v175
    %v177 = vpop.f32.mrf.mxu0
    %178 = vdwg.mxu0
    %179 = vmatpush.bf16.msra.mxu0 %v149
    %180 = vmatpush.bf16.msra.mxu0 %v148
    %181 = vmatpush.bf16.msra.mxu0 %v147
    %182 = vmatpush.bf16.msra.mxu0 %v146
    %183 = vmatpush.bf16.msra.mxu0 %v145
    %184 = vmatpush.bf16.msra.mxu0 %v144
    %185 = vmatpush.bf16.msra.mxu0 %v143
    %186 = vmatpush.bf16.msra.mxu0 %v142
    %187 = vmatmul.bf16.gmra.mxu0 %v67
    %v188 = vpop.f32.mrf.mxu0
    %v189 = vadd.f32 %v176, %v188
    %v190 = vpop.f32.mrf.mxu0
    %191 = vdwg.mxu0
    %v192 = vadd.f32 %v30, %v189
    %193 = vst [vmem:[#allocation2] sm:$0x3] %v192
    // Predicated region
    $region30: #{_gcn3conv_forward.13} parent=1 // pred_check
      %p194 = pneg %p25
    $region31: #{_gcn3conv_forward.13} parent=1 // pred_check_branch
      %196 = sbr.rel (%p194) target = $region33
    $region32: #{_gcn3conv_forward.13} parent=1 // pred_region
      %v197 = vld [vmem:[#allocation2] sm:$0x3]
      %v198 = vpack.c.bf16 %v197, %v197
      %v199 = vld [vmem:[%s2] sm:$0xf]
      %v200 = vld [vmem:[%s2 + $0x4] sm:$0xf]
      %v201 = vld [vmem:[%s2 + $0x8] sm:$0xf]
      %v202 = vld [vmem:[%s2 + $0xc] sm:$0xf]
      %v203 = vld [vmem:[%s2 + $0x10] sm:$0xf]
      %v204 = vld [vmem:[%s2 + $0x14] sm:$0xf]
      %v205 = vld [vmem:[%s2 + $0x18] sm:$0xf]
      %v206 = vld [vmem:[%s2 + $0x1c] sm:$0xf]
      %v207 = vld [vmem:[%s2 + $0x20] sm:$0xf]
      %v208 = vld [vmem:[%s2 + $0x24] sm:$0xf]
      %v209 = vld [vmem:[%s2 + $0x28] sm:$0xf]
      %v210 = vld [vmem:[%s2 + $0x2c] sm:$0xf]
      %v211 = vld [vmem:[%s2 + $0x30] sm:$0xf]
      %v212 = vld [vmem:[%s2 + $0x34] sm:$0xf]
      %v213 = vld [vmem:[%s2 + $0x38] sm:$0xf]
      %v214 = vld [vmem:[%s2 + $0x3c] sm:$0xf]
      %v215 = vld [vmem:[%s3] sm:$0x1]
      %v217 = vperm.slane %v215, 0
      %v235 = vunpack.c.l.b16 %v199
      %v236 = vunpack.c.l.b16 %v200
      %v237 = vunpack.c.l.b16 %v201
      %v238 = vunpack.c.l.b16 %v202
      %v239 = vunpack.c.l.b16 %v203
      %v240 = vunpack.c.l.b16 %v204
      %v241 = vunpack.c.l.b16 %v205
      %v242 = vunpack.c.l.b16 %v206
      %v243 = vunpack.c.l.b16 %v207
      %v244 = vunpack.c.l.b16 %v208
      %v245 = vunpack.c.l.b16 %v209
      %v246 = vunpack.c.l.b16 %v210
      %v247 = vunpack.c.l.b16 %v211
      %v248 = vunpack.c.l.b16 %v212
      %v249 = vunpack.c.l.b16 %v213
      %v250 = vunpack.c.l.b16 %v214
      %v251 = vpack.c.b16 %v236, %v235
      %v252 = vpack.c.b16 %v238, %v237
      %v253 = vpack.c.b16 %v240, %v239
      %v254 = vpack.c.b16 %v242, %v241
      %v255 = vpack.c.b16 %v244, %v243
      %v256 = vpack.c.b16 %v246, %v245
      %v257 = vpack.c.b16 %v248, %v247
      %v258 = vpack.c.b16 %v250, %v249
      %267 = vmatpush.bf16.msra.mxu0 %v258
      %268 = vmatpush.bf16.msra.mxu0 %v257
      %269 = vmatpush.bf16.msra.mxu0 %v256
      %270 = vmatpush.bf16.msra.mxu0 %v255
      %271 = vmatpush.bf16.msra.mxu0 %v254
      %272 = vmatpush.bf16.msra.mxu0 %v253
      %273 = vmatpush.bf16.msra.mxu0 %v252
      %274 = vmatpush.bf16.msra.mxu0 %v251
      %275 = vmatmul.bf16.gmra.mxu0 %v198
      %v276 = vpop.f32.mrf.mxu0
      %v277 = vadd.f32 %v217, %v276
      %v278 = vpop.f32.mrf.mxu0
      %279 = vdwg.mxu0
      %v280 = vmax.f32 %v277, 0.0
      %v281 = vpack.c.bf16 %v280, %v280
      %v282 = vld [vmem:[%s4] sm:$0xf]
      %v283 = vld [vmem:[%s4 + $0x4] sm:$0xf]
      %v284 = vld [vmem:[%s5] sm:$0x1]
      %v286 = vperm.slane %v284, 0
      %v290 = vunpack.c.l.b16 %v282
      %v291 = vunpack.c.l.b16 %v283
      %v292 = vpack.c.b16 %v291, %v290
      %vm294 = vcmask 130048
      %v296 = vsel %vm294, %v281, 0
      %298 = vmatpush.bf16.msra.mxu0 0
      %299 = vmatpush.bf16.msra.mxu0 0
      %300 = vmatpush.bf16.msra.mxu0 0
      %301 = vmatpush.bf16.msra.mxu0 0
      %302 = vmatpush.bf16.msra.mxu0 0
      %303 = vmatpush.bf16.msra.mxu0 0
      %304 = vmatpush.bf16.msra.mxu0 0
      %305 = vmatpush.bf16.msra.mxu0 %v292
      %306 = vmatmul.bf16.gmra.mxu0 %v296
      %v307 = vpop.f32.mrf.mxu0
      %v308 = vadd.f32 %v286, %v307
      %v309 = vpop.f32.mrf.mxu0
      %310 = vdwg.mxu0
      %vm311 = vcmask 25600
      %312 = vst.msk [vmem:[#allocation3] sm:$0x3] %vm311, %v308
    $region33: #{_gcn3conv_forward.13} parent=1 // pred_fallthru
      _
    // Predicated region
    $region34: #{_gcn3conv_forward.13} parent=1 // pred_check
      _
    $region35: #{_gcn3conv_forward.13} parent=1 // pred_check_branch
      %314 = sbr.rel (0) target = $region37
    $region36: #{_gcn3conv_forward.13} parent=1 // pred_region
      %316 = vsyncadd [#allocation4], 0
      %s318 = sshll.u32 [#allocation3], 4
      %s319 = int_to_ptr.vmem [resolvable:$true] %s318
      %s320 = sshll.u32 %s6, 4
      %s321 = int_to_ptr.hbm [resolvable:$true] %s320
      %323 = dma.vmem_to_hbm [thread:$0]  %s319, 32, %s321, [#allocation4]
    $region37: #{_gcn3conv_forward.13} parent=1 // pred_fallthru
      _
    // Predicated region
    $region38: #{_gcn3conv_forward.13} parent=1 // pred_check
      _
    $region39: #{_gcn3conv_forward.13} parent=1 // pred_check_branch
      %325 = sbr.rel (0) target = $region41
    $region40: #{_gcn3conv_forward.13} parent=1 // pred_region
      %327 = dma.done [#allocation4], 32
    $region41: #{_gcn3conv_forward.13} parent=1 // pred_fallthru
      _
    %328 = vsyncpa [#allocation4], 1

</llo_original>
